<compile_context>
chip_gen: v7x
topology: tpu7x:2x2x1
jax: 0.10.0
libtpu: 0.0.40
codegen_flags: <defaults>
</compile_context>

<pallas_src>
import functools

import jax
import jax.numpy as jnp
import numpy as np
from jax import lax
from jax.experimental import pallas as pl
from jax.experimental.pallas import tpu as pltpu


def _round_up(a, m):
    return ((a + m - 1) // m) * m


def _num_tensorcores():
    """Best-effort TensorCores-per-chip (v5e/v6e: 1, v7x: 2). Falls back to 1."""
    try:
        info = pltpu.get_tpu_info()
    except Exception:
        return 1
    for attr in ("num_cores", "tensorcores_per_chip", "num_tensorcores",
                 "cores_per_chip"):
        n = getattr(info, attr, None)
        if isinstance(n, int) and n >= 1:
            return n
    return 1


def fused_linear_kernel(x_ref, w_ref, b_ref, o_ref, *, precision):
    # y = x_tile @ W_fused + b_fused ; f32 accumulation on the MXU.
    # x arrives in its original dtype (f32) straight from HBM; cast to the
    # weight dtype here (in-kernel, VPU) instead of a wrapper-side astype pass.
    x = x_ref[...].astype(w_ref.dtype)
    acc = jnp.dot(x, w_ref[...], preferred_element_type=jnp.float32,
                  precision=precision)
    o_ref[...] = (acc + b_ref[...]).astype(o_ref.dtype)


def fuse_autoencoder_params(params, compute_dtype=jnp.bfloat16):
    """Fold the 3 activation-free Linear layers into a single affine map.

    Call ONCE per parameter set (outside the hot path) and reuse the result.
    params follow PyTorch convention: W_i (out_features, in_features), b_i (out,).
    Returns {"w": (h_feats, 160) compute_dtype, "b": (1, 160) float32}.
    """
    hp = lax.Precision.HIGHEST
    w1t = params["w1"].T.astype(jnp.float32)   # (h,    h//2)
    w2t = params["w2"].T.astype(jnp.float32)   # (h//2, h//4)
    w3t = params["w3"].T.astype(jnp.float32)   # (h//4, 160)
    w_fused = jnp.dot(jnp.dot(w1t, w2t, precision=hp), w3t, precision=hp)
    b_fused = (jnp.dot(jnp.dot(params["b1"].astype(jnp.float32), w2t, precision=hp)
                       + params["b2"].astype(jnp.float32),
                       w3t, precision=hp)
               + params["b3"].astype(jnp.float32)).reshape(1, -1)
    return {"w": w_fused.astype(compute_dtype),
            "b": b_fused.astype(jnp.float32)}


def autoencoder_forward(x, fused, *, batch_tile=2048, out_dtype=None,
                        num_cores=None, min_core_split=256):
    """x: (B, h_feats). fused: output of fuse_autoencoder_params().
    Returns (B, 160) in out_dtype (defaults to x.dtype; pass jnp.bfloat16 to
    halve output writeback bytes if the consumer tolerates it)."""
    B, h_feats = x.shape
    w, b = fused["w"], fused["b"]
    assert w.shape[0] == h_feats, "fused weight does not match input features"
    d_out = w.shape[1]
    out_dtype = x.dtype if out_dtype is None else out_dtype

    if num_cores is None:
        num_cores = _num_tensorcores()

    # --- batch tiling ---------------------------------------------------
    # Single maximal tile whenever B fits (on 1-TC chips any grid split is
    # pure per-step overhead). On multi-TC chips with large B, make the step
    # count a multiple of the core count so CORE_PARALLEL keeps both fed.
    tb = min(batch_tile, _round_up(B, 8))
    if num_cores > 1 and B >= min_core_split:
        n_steps = _round_up(pl.cdiv(B, tb), num_cores)
        tb = max(8, _round_up(pl.cdiv(B, n_steps), 8))
    grid = (pl.cdiv(B, tb),)

    if num_cores > 1 and grid[0] >= 2:
        semantics = (pltpu.CORE_PARALLEL,)   # actually shards across TCs (v7x)
    else:
        semantics = ("arbitrary",)           # serial loop on 1-TC chips

    # f32 weights => high-accuracy path; bf16 weights => native MXU path.
    precision = lax.Precision.HIGHEST if w.dtype == jnp.float32 else None
    kernel = functools.partial(fused_linear_kernel, precision=precision)

    bytes_accessed = (x.size * x.dtype.itemsize
                      + w.size * w.dtype.itemsize
                      + b.size * b.dtype.itemsize
                      + B * d_out * jnp.dtype(out_dtype).itemsize)
    cost = pl.CostEstimate(flops=2 * B * h_feats * d_out,
                           transcendentals=0,
                           bytes_accessed=bytes_accessed)

    return pl.pallas_call(
        kernel,
        out_shape=jax.ShapeDtypeStruct((B, d_out), out_dtype),
        grid_spec=pltpu.PrefetchScalarGridSpec(
            num_scalar_prefetch=0,
            grid=grid,
            in_specs=[
                pl.BlockSpec((tb, h_feats), lambda i: (i, 0)),      # x tile (f32)
                pl.BlockSpec((h_feats, d_out), lambda i: (0, 0)),   # fused W (grid-invariant)
                pl.BlockSpec((1, d_out), lambda i: (0, 0)),         # fused b (grid-invariant)
            ],
            out_specs=pl.BlockSpec((tb, d_out), lambda i: (i, 0)),
        ),
        compiler_params=pltpu.CompilerParams(dimension_semantics=semantics),
        cost_estimate=cost,
    )(x, w, b)


def init_params(key, h_feats):
    """nn.Linear-style init: weight (out, in), bias (out,),
    uniform(-1/sqrt(fan_in), 1/sqrt(fan_in))."""
    dims = [(h_feats, h_feats // 2), (h_feats // 2, h_feats // 4),
            (h_feats // 4, 160)]
    params = {}
    keys = jax.random.split(key, 2 * len(dims))
    for li, (fan_in, fan_out) in enumerate(dims):
        bound = 1.0 / np.sqrt(fan_in)
        params[f"w{li+1}"] = jax.random.uniform(
            keys[2 * li], (fan_out, fan_in), jnp.float32, -bound, bound)
        params[f"b{li+1}"] = jax.random.uniform(
            keys[2 * li + 1], (fan_out,), jnp.float32, -bound, bound)
    return params


if __name__ == "__main__":
    h_feats = 256   # layer dims: 256 -> 128 -> 64 -> 160
    batch = 32

    key = jax.random.PRNGKey(0)
    kx, kp = jax.random.split(key)
    x = jax.random.normal(kx, (batch, h_feats), dtype=jnp.float32)
    params = init_params(kp, h_feats)

    # Exact numpy (f64) reference of the layer-by-layer PyTorch forward:
    # y = ((x @ W1.T + b1) @ W2.T + b2) @ W3.T + b3
    ref = np.asarray(x, dtype=np.float64)
    for li in range(1, 4):
        ref = ref @ np.asarray(params[f"w{li}"], dtype=np.float64).T \
              + np.asarray(params[f"b{li}"], dtype=np.float64)
    ref = ref.astype(np.float32)

    # Fuse the parameters ONCE (outside the hot path).
    fused_f32 = fuse_autoencoder_params(params, compute_dtype=jnp.float32)
    fused_bf16 = fuse_autoencoder_params(params, compute_dtype=jnp.bfloat16)

    # f32 compute path (HIGHEST precision) -> tight tolerance.
    out_f32 = jax.block_until_ready(autoencoder_forward(x, fused_f32))
    np.testing.assert_allclose(np.asarray(out_f32), ref, rtol=1e-3, atol=1e-3)

    # bf16 MXU path (default / performance config), f32 output.
    out_bf16 = jax.block_until_ready(autoencoder_forward(x, fused_bf16))
    np.testing.assert_allclose(np.asarray(out_bf16), ref, rtol=2e-2, atol=2e-2)

    # bf16 output path (halves writeback bytes) -> looser tolerance.
    out_bf16_io = jax.block_until_ready(
        autoencoder_forward(x, fused_bf16, out_dtype=jnp.bfloat16))
    np.testing.assert_allclose(np.asarray(out_bf16_io, dtype=np.float32), ref,
                               rtol=3e-2, atol=3e-2)

    assert out_f32.shape == (batch, 160)
    assert out_bf16_io.dtype == jnp.bfloat16
    print("KERNEL_OK")
</pallas_src>

<mosaic_0001>
module attributes {stable_mosaic.version = 11 : i64} {
  func.func @fused_linear_kernel(%arg0: i32, %arg1: memref<32x256xf32, #tpu.memory_space<vmem>>, %arg2: memref<256x160xf32, #tpu.memory_space<vmem>>, %arg3: memref<1x160xf32, #tpu.memory_space<vmem>>, %arg4: memref<32x160xf32, #tpu.memory_space<vmem>>) attributes {dimension_semantics = [#tpu.dimension_semantics<arbitrary>], iteration_bounds = array<i64: 1>, scalar_prefetch = 0 : i64, scratch_operands = 0 : i64, tpu.core_type = #tpu.core_type<tc>, window_params = [{transform_indices = @transform_0, window_bounds = array<i64: 32, 256>}, {pipeline_mode = #tpu.pipeline_mode<synchronous>, transform_indices = @transform_1, window_bounds = array<i64: 256, 160>}, {pipeline_mode = #tpu.pipeline_mode<synchronous>, transform_indices = @transform_2, window_bounds = array<i64: 1, 160>}, {transform_indices = @transform_3, window_bounds = array<i64: 32, 160>}]} {
    %c0 = arith.constant 0 : index
    %c0_0 = arith.constant 0 : index
    %0 = vector.load %arg1[%c0, %c0_0] : memref<32x256xf32, #tpu.memory_space<vmem>>, vector<32x256xf32>
    %c0_1 = arith.constant 0 : index
    %c0_2 = arith.constant 0 : index
    %1 = vector.load %arg2[%c0_1, %c0_2] : memref<256x160xf32, #tpu.memory_space<vmem>>, vector<256x160xf32>
    %cst = arith.constant dense<0.000000e+00> : vector<32x160xf32>
    %2 = tpu.matmul %0, %1, %cst {dimension_numbers = #tpu.dot_dimension_numbers<[1], [0], [0], [1], [0, 0, 1, 1], [], []>, precision = #tpu.contract_precision<fp32>} : vector<32x256xf32>, vector<256x160xf32>, vector<32x160xf32> -> vector<32x160xf32>
    %c0_3 = arith.constant 0 : index
    %c0_4 = arith.constant 0 : index
    %3 = vector.load %arg3[%c0_3, %c0_4] : memref<1x160xf32, #tpu.memory_space<vmem>>, vector<1x160xf32>
    %4 = vector.broadcast %3 : vector<1x160xf32> to vector<32x160xf32>
    %5 = arith.addf %2, %4 : vector<32x160xf32>
    %c0_5 = arith.constant 0 : index
    %c0_6 = arith.constant 0 : index
    %6 = vector.load %arg4[%c0_5, %c0_6] : memref<32x160xf32, #tpu.memory_space<vmem>>, vector<32x160xf32>
    tpu.vector_store %arg4[%c0_5, %c0_6], %5 {strides = array<i32>} : memref<32x160xf32, #tpu.memory_space<vmem>>, vector<32x160xf32>,
    return
  }
  func.func @transform_0(%arg0: i32) -> (i32, i32) {
    %c0_i32 = arith.constant 0 : i32
    %c0_i32_0 = arith.constant 0 : i32
    return %arg0, %c0_i32 : i32, i32
  }
  func.func @transform_1(%arg0: i32) -> (i32, i32) {
    %c0_i32 = arith.constant 0 : i32
    %c0_i32_0 = arith.constant 0 : i32
    %c0_i32_1 = arith.constant 0 : i32
    return %c0_i32, %c0_i32_0 : i32, i32
  }
  func.func @transform_2(%arg0: i32) -> (i32, i32) {
    %c0_i32 = arith.constant 0 : i32
    %c0_i32_0 = arith.constant 0 : i32
    %c0_i32_1 = arith.constant 0 : i32
    return %c0_i32, %c0_i32_0 : i32, i32
  }
  func.func @transform_3(%arg0: i32) -> (i32, i32) {
    %c0_i32 = arith.constant 0 : i32
    %c0_i32_0 = arith.constant 0 : i32
    return %arg0, %c0_i32 : i32, i32
  }
}

</mosaic_0001>

<llo_original>
// kernel: tpu_custom_call.1
$region0: #{tpu_custom_call.1}
  #allocation0 [shape = 'u32[]', space=smem, size = 0x4, offset = 0x4, fixed_abs, tag = 'smem constant byte address 0x4 - core index']
  #allocation1 [shape = 'u32[144,128]{1,0:T(1,128)}', space=vmem, size = 0x12000, scoped, tag = 'internal scratch']
  %s0 = inlined_call_operand.vmem [shape: f32[32,256], index: 0, kind: input, shape index: {}]
  %s1 = inlined_call_operand.vmem [shape: f32[256,160], index: 1, kind: input, shape index: {}]
  %s2 = inlined_call_operand.vmem [shape: f32[1,160], index: 2, kind: input, shape index: {}]
  %s3 = inlined_call_operand.hbm [shape: f32[32,160], index: 3, kind: output, shape index: {}]
  %s4 = sld [smem:[#allocation0]]
  $region22: #{tpu_custom_call.1} parent=0
    _
  %s6 = ssub.s32 1, %s4
  %s7 = scalar_select 0, %s6, %s4
  $region1: #{tpu_custom_call.1} parent=0
    #allocation2 [shape = 'u8[32768]{0}', space=vmem, size = 0x8000, scoped, tag = 'output window, operand 0, single buffered']
    #allocation3 [shape = 's32[1]{0}', space=sflag, size = 0x4, scoped, tag = 'scoped memory for tpu_custom_call.1']
    %8 = vsyncpa [#allocation3], 0
    // Predicated region
    $region2: #{tpu_custom_call.1} parent=1 // pred_check
      _
    $region3: #{tpu_custom_call.1} parent=1 // pred_check_branch
      %10 = sbr.rel (0) target = $region5
    $region4: #{tpu_custom_call.1} parent=1 // pred_region
      _
    $region5: #{tpu_custom_call.1} parent=1 // pred_fallthru
      _
    // Predicated region
    $region6: #{tpu_custom_call.1} parent=1 // pred_check
      _
    $region7: #{tpu_custom_call.1} parent=1 // pred_check_branch
      %12 = sbr.rel (0) target = $region9
    $region8: #{tpu_custom_call.1} parent=1 // pred_region
      _
    $region9: #{tpu_custom_call.1} parent=1 // pred_fallthru
      _
    // Predicated region
    $region10: #{tpu_custom_call.1} parent=1 // pred_check
      _
    $region11: #{tpu_custom_call.1} parent=1 // pred_check_branch
      %14 = sbr.rel (0) target = $region13
    $region12: #{tpu_custom_call.1} parent=1 // pred_region
      _
    $region13: #{tpu_custom_call.1} parent=1 // pred_fallthru
      _
    %v15 = vld [vmem:[%s0] sm:$0xff]
    %v16 = vld [vmem:[%s0 + $0x8] sm:$0xff]
    %v17 = vld [vmem:[%s0 + $0x10] sm:$0xff]
    %v18 = vld [vmem:[%s0 + $0x18] sm:$0xff]
    %v19 = vld [vmem:[%s0 + $0x20] sm:$0xff]
    %v20 = vld [vmem:[%s0 + $0x28] sm:$0xff]
    %v21 = vld [vmem:[%s0 + $0x30] sm:$0xff]
    %v22 = vld [vmem:[%s0 + $0x38] sm:$0xff]
    %v23 = vld [vmem:[%s1] sm:$0xff]
    %v24 = vld [vmem:[%s1 + $0x8] sm:$0xff]
    %v25 = vld [vmem:[%s1 + $0x10] sm:$0xff]
    %v26 = vld [vmem:[%s1 + $0x18] sm:$0xff]
    %v27 = vld [vmem:[%s1 + $0x20] sm:$0xff]
    %v28 = vld [vmem:[%s1 + $0x28] sm:$0xff]
    %v29 = vld [vmem:[%s1 + $0x30] sm:$0xff]
    %v30 = vld [vmem:[%s1 + $0x38] sm:$0xff]
    %v31 = vld [vmem:[%s1 + $0x40] sm:$0xff]
    %v32 = vld [vmem:[%s1 + $0x48] sm:$0xff]
    %v33 = vld [vmem:[%s1 + $0x50] sm:$0xff]
    %v34 = vld [vmem:[%s1 + $0x58] sm:$0xff]
    %v35 = vld [vmem:[%s1 + $0x60] sm:$0xff]
    %v36 = vld [vmem:[%s1 + $0x68] sm:$0xff]
    %v37 = vld [vmem:[%s1 + $0x70] sm:$0xff]
    %v38 = vld [vmem:[%s1 + $0x78] sm:$0xff]
    %v39 = vld [vmem:[%s1 + $0x80] sm:$0xff]
    %v40 = vld [vmem:[%s1 + $0x88] sm:$0xff]
    %v41 = vld [vmem:[%s1 + $0x90] sm:$0xff]
    %v42 = vld [vmem:[%s1 + $0x98] sm:$0xff]
    %v43 = vld [vmem:[%s1 + $0xa0] sm:$0xff]
    %v44 = vld [vmem:[%s1 + $0xa8] sm:$0xff]
    %v45 = vld [vmem:[%s1 + $0xb0] sm:$0xff]
    %v46 = vld [vmem:[%s1 + $0xb8] sm:$0xff]
    %v47 = vld [vmem:[%s1 + $0xc0] sm:$0xff]
    %v48 = vld [vmem:[%s1 + $0xc8] sm:$0xff]
    %v49 = vld [vmem:[%s1 + $0xd0] sm:$0xff]
    %v50 = vld [vmem:[%s1 + $0xd8] sm:$0xff]
    %v51 = vld [vmem:[%s1 + $0xe0] sm:$0xff]
    %v52 = vld [vmem:[%s1 + $0xe8] sm:$0xff]
    %v53 = vld [vmem:[%s1 + $0xf0] sm:$0xff]
    %v54 = vld [vmem:[%s1 + $0xf8] sm:$0xff]
    %v55 = vld [vmem:[%s1 + $0x100] sm:$0xff]
    %v56 = vld [vmem:[%s1 + $0x108] sm:$0xff]
    %v57 = vld [vmem:[%s1 + $0x110] sm:$0xff]
    %v58 = vld [vmem:[%s1 + $0x118] sm:$0xff]
    %v59 = vld [vmem:[%s1 + $0x120] sm:$0xff]
    %v60 = vld [vmem:[%s1 + $0x128] sm:$0xff]
    %v61 = vld [vmem:[%s1 + $0x130] sm:$0xff]
    %v62 = vld [vmem:[%s1 + $0x138] sm:$0xff]
    %v63 = vld [vmem:[%s1 + $0x140] sm:$0xff]
    %v64 = vld [vmem:[%s1 + $0x148] sm:$0xff]
    %v65 = vld [vmem:[%s1 + $0x150] sm:$0xff]
    %v66 = vld [vmem:[%s1 + $0x158] sm:$0xff]
    %v67 = vld [vmem:[%s1 + $0x160] sm:$0xff]
    %v68 = vld [vmem:[%s1 + $0x168] sm:$0xff]
    %v69 = vld [vmem:[%s1 + $0x170] sm:$0xff]
    %v70 = vld [vmem:[%s1 + $0x178] sm:$0xff]
    %v71 = vld [vmem:[%s1 + $0x180] sm:$0xff]
    %v72 = vld [vmem:[%s1 + $0x188] sm:$0xff]
    %v73 = vld [vmem:[%s1 + $0x190] sm:$0xff]
    %v74 = vld [vmem:[%s1 + $0x198] sm:$0xff]
    %v75 = vld [vmem:[%s1 + $0x1a0] sm:$0xff]
    %v76 = vld [vmem:[%s1 + $0x1a8] sm:$0xff]
    %v77 = vld [vmem:[%s1 + $0x1b0] sm:$0xff]
    %v78 = vld [vmem:[%s1 + $0x1b8] sm:$0xff]
    %v79 = vld [vmem:[%s1 + $0x1c0] sm:$0xff]
    %v80 = vld [vmem:[%s1 + $0x1c8] sm:$0xff]
    %v81 = vld [vmem:[%s1 + $0x1d0] sm:$0xff]
    %v82 = vld [vmem:[%s1 + $0x1d8] sm:$0xff]
    %v83 = vld [vmem:[%s1 + $0x1e0] sm:$0xff]
    %v84 = vld [vmem:[%s1 + $0x1e8] sm:$0xff]
    %v85 = vld [vmem:[%s1 + $0x1f0] sm:$0xff]
    %v86 = vld [vmem:[%s1 + $0x1f8] sm:$0xff]
    %v87 = vld [vmem:[%s2] sm:$0x3]
    %v89 = vlaneseq
    %v90 = vshrl.u32 %v89, 7
    %v91 = vsub.s32 0, %v90
    %v92 = vrot.slane %v87, %v91
    %v93 = vlaneseq
    %v94 = vshrl.u32 %v93, 7
    %v95 = vsub.s32 1, %v94
    %v96 = vrot.slane %v87, %v95
    %v99 = vand.u32 %v24, 4294901760
    %100 = vmatprep.subr.mxu0 %v99
    %v101 = vand.u32 %v23, 4294901760
    %102 = vmatpush1.msra.mxu0 %v101
    %v103 = vand.u32 %v26, 4294901760
    %104 = vmatprep.subr.mxu0 %v103
    %v105 = vand.u32 %v25, 4294901760
    %106 = vmatpush1.msra.mxu0 %v105
    %v107 = vand.u32 %v28, 4294901760
    %108 = vmatprep.subr.mxu0 %v107
    %v109 = vand.u32 %v27, 4294901760
    %110 = vmatpush1.msra.mxu0 %v109
    %v111 = vand.u32 %v30, 4294901760
    %112 = vmatprep.subr.mxu0 %v111
    %v113 = vand.u32 %v29, 4294901760
    %114 = vmatpush1.msra.mxu0 %v113
    %v115 = vand.u32 %v32, 4294901760
    %116 = vmatprep.subr.mxu0 %v115
    %v117 = vand.u32 %v31, 4294901760
    %118 = vmatpush1.msra.mxu0 %v117
    %v119 = vand.u32 %v34, 4294901760
    %120 = vmatprep.subr.mxu0 %v119
    %v121 = vand.u32 %v33, 4294901760
    %122 = vmatpush1.msra.mxu0 %v121
    %v123 = vand.u32 %v36, 4294901760
    %124 = vmatprep.subr.mxu0 %v123
    %v125 = vand.u32 %v35, 4294901760
    %126 = vmatpush1.msra.mxu0 %v125
    %v127 = vand.u32 %v38, 4294901760
    %128 = vmatprep.subr.mxu0 %v127
    %v129 = vand.u32 %v37, 4294901760
    %130 = vmatpush1.msra.mxu0 %v129
    %v131 = vand.u32 %v40, 4294901760
    %132 = vmatprep.subr.mxu0 %v131
    %v133 = vand.u32 %v39, 4294901760
    %134 = vmatpush1.msra.mxu0 %v133
    %v135 = vand.u32 %v42, 4294901760
    %136 = vmatprep.subr.mxu0 %v135
    %v137 = vand.u32 %v41, 4294901760
    %138 = vmatpush1.msra.mxu0 %v137
    %v139 = vand.u32 %v44, 4294901760
    %140 = vmatprep.subr.mxu0 %v139
    %v141 = vand.u32 %v43, 4294901760
    %142 = vmatpush1.msra.mxu0 %v141
    %v143 = vand.u32 %v46, 4294901760
    %144 = vmatprep.subr.mxu0 %v143
    %v145 = vand.u32 %v45, 4294901760
    %146 = vmatpush1.msra.mxu0 %v145
    %v147 = vand.u32 %v48, 4294901760
    %148 = vmatprep.subr.mxu0 %v147
    %v149 = vand.u32 %v47, 4294901760
    %150 = vmatpush1.msra.mxu0 %v149
    %v151 = vand.u32 %v50, 4294901760
    %152 = vmatprep.subr.mxu0 %v151
    %v153 = vand.u32 %v49, 4294901760
    %154 = vmatpush1.msra.mxu0 %v153
    %v155 = vand.u32 %v52, 4294901760
    %156 = vmatprep.subr.mxu0 %v155
    %v157 = vand.u32 %v51, 4294901760
    %158 = vmatpush1.msra.mxu0 %v157
    %v159 = vand.u32 %v54, 4294901760
    %160 = vmatprep.subr.mxu0 %v159
    %v161 = vand.u32 %v53, 4294901760
    %162 = vmatpush1.msra.mxu0 %v161
    %v163 = vand.u32 %v56, 4294901760
    %164 = vmatprep.subr.mxu0 %v163
    %v165 = vand.u32 %v55, 4294901760
    %166 = vmatpush1.msra.mxu0 %v165
    %v167 = vand.u32 %v58, 4294901760
    %168 = vmatprep.subr.mxu0 %v167
    %v169 = vand.u32 %v57, 4294901760
    %170 = vmatpush1.msra.mxu0 %v169
    %v171 = vand.u32 %v60, 4294901760
    %172 = vmatprep.subr.mxu0 %v171
    %v173 = vand.u32 %v59, 4294901760
    %174 = vmatpush1.msra.mxu0 %v173
    %v175 = vand.u32 %v62, 4294901760
    %176 = vmatprep.subr.mxu0 %v175
    %v177 = vand.u32 %v61, 4294901760
    %178 = vmatpush1.msra.mxu0 %v177
    %v179 = vand.u32 %v64, 4294901760
    %180 = vmatprep.subr.mxu0 %v179
    %v181 = vand.u32 %v63, 4294901760
    %182 = vmatpush1.msra.mxu0 %v181
    %v183 = vand.u32 %v66, 4294901760
    %184 = vmatprep.subr.mxu0 %v183
    %v185 = vand.u32 %v65, 4294901760
    %186 = vmatpush1.msra.mxu0 %v185
    %v187 = vand.u32 %v68, 4294901760
    %188 = vmatprep.subr.mxu0 %v187
    %v189 = vand.u32 %v67, 4294901760
    %190 = vmatpush1.msra.mxu0 %v189
    %v191 = vand.u32 %v70, 4294901760
    %192 = vmatprep.subr.mxu0 %v191
    %v193 = vand.u32 %v69, 4294901760
    %194 = vmatpush1.msra.mxu0 %v193
    %v195 = vand.u32 %v72, 4294901760
    %196 = vmatprep.subr.mxu0 %v195
    %v197 = vand.u32 %v71, 4294901760
    %198 = vmatpush1.msra.mxu0 %v197
    %v199 = vand.u32 %v74, 4294901760
    %200 = vmatprep.subr.mxu0 %v199
    %v201 = vand.u32 %v73, 4294901760
    %202 = vmatpush1.msra.mxu0 %v201
    %v203 = vand.u32 %v76, 4294901760
    %204 = vmatprep.subr.mxu0 %v203
    %v205 = vand.u32 %v75, 4294901760
    %206 = vmatpush1.msra.mxu0 %v205
    %v207 = vand.u32 %v78, 4294901760
    %208 = vmatprep.subr.mxu0 %v207
    %v209 = vand.u32 %v77, 4294901760
    %210 = vmatpush1.msra.mxu0 %v209
    %v211 = vand.u32 %v80, 4294901760
    %212 = vmatprep.subr.mxu0 %v211
    %v213 = vand.u32 %v79, 4294901760
    %214 = vmatpush1.msra.mxu0 %v213
    %v215 = vand.u32 %v82, 4294901760
    %216 = vmatprep.subr.mxu0 %v215
    %v217 = vand.u32 %v81, 4294901760
    %218 = vmatpush1.msra.mxu0 %v217
    %v219 = vand.u32 %v84, 4294901760
    %220 = vmatprep.subr.mxu0 %v219
    %v221 = vand.u32 %v83, 4294901760
    %222 = vmatpush1.msra.mxu0 %v221
    %v223 = vand.u32 %v86, 4294901760
    %224 = vmatprep.subr.mxu0 %v223
    %v225 = vand.u32 %v85, 4294901760
    %226 = vmatpush1.msra.mxu0 %v225
    %v227 = vand.u32 %v16, 4294901760
    %v228 = vsub.f32 %v16, %v227
    %v229 = vand.u32 %v228, 4294901760
    %v230 = vsub.f32 %v228, %v229
    %v231 = vand.u32 %v230, 4294901760
    %232 = vmatprep.mubr.f32.mxu0 %v231
    %v233 = vand.u32 %v15, 4294901760
    %v234 = vsub.f32 %v15, %v233
    %v235 = vand.u32 %v234, 4294901760
    %v236 = vsub.f32 %v234, %v235
    %v237 = vand.u32 %v236, 4294901760
    %238 = vmatmul.mubr.f32.gmra.mrb[0].mxu0 %v237
    %v239 = vpop.f32.mrb[0].mxu0
    %v240 = vadd.f32 %v92, %v239
    %v241 = vpop.f32.mrb[0].mxu0
    %v242 = vadd.f32 %v96, %v241
    %v243 = vand.u32 %v18, 4294901760
    %v244 = vsub.f32 %v18, %v243
    %v245 = vand.u32 %v244, 4294901760
    %v246 = vsub.f32 %v244, %v245
    %v247 = vand.u32 %v246, 4294901760
    %248 = vmatprep.mubr.f32.mxu0 %v247
    %v249 = vand.u32 %v17, 4294901760
    %v250 = vsub.f32 %v17, %v249
    %v251 = vand.u32 %v250, 4294901760
    %v252 = vsub.f32 %v250, %v251
    %v253 = vand.u32 %v252, 4294901760
    %254 = vmatmul.mubr.f32.gmra.mrb[0].mxu0 %v253
    %v255 = vpop.f32.mrb[0].mxu0
    %v256 = vadd.f32 %v92, %v255
    %v257 = vpop.f32.mrb[0].mxu0
    %v258 = vadd.f32 %v96, %v257
    %v259 = vand.u32 %v20, 4294901760
    %v260 = vsub.f32 %v20, %v259
    %v261 = vand.u32 %v260, 4294901760
    %v262 = vsub.f32 %v260, %v261
    %v263 = vand.u32 %v262, 4294901760
    %264 = vmatprep.mubr.f32.mxu0 %v263
    %v265 = vand.u32 %v19, 4294901760
    %v266 = vsub.f32 %v19, %v265
    %v267 = vand.u32 %v266, 4294901760
    %v268 = vsub.f32 %v266, %v267
    %v269 = vand.u32 %v268, 4294901760
    %270 = vmatmul.mubr.f32.gmra.mrb[0].mxu0 %v269
    %v271 = vpop.f32.mrb[0].mxu0
    %v272 = vadd.f32 %v92, %v271
    %v273 = vpop.f32.mrb[0].mxu0
    %v274 = vadd.f32 %v96, %v273
    %v275 = vand.u32 %v22, 4294901760
    %v276 = vsub.f32 %v22, %v275
    %v277 = vand.u32 %v276, 4294901760
    %v278 = vsub.f32 %v276, %v277
    %v279 = vand.u32 %v278, 4294901760
    %280 = vmatprep.mubr.f32.mxu0 %v279
    %v281 = vand.u32 %v21, 4294901760
    %v282 = vsub.f32 %v21, %v281
    %v283 = vand.u32 %v282, 4294901760
    %v284 = vsub.f32 %v282, %v283
    %v285 = vand.u32 %v284, 4294901760
    %286 = vmatmul.mubr.f32.gmra.mrb[0].mxu0 %v285
    %v287 = vpop.f32.mrb[0].mxu0
    %v288 = vadd.f32 %v92, %v287
    %v289 = vpop.f32.mrb[0].mxu0
    %v290 = vadd.f32 %v96, %v289
    %291 = vdwg.mxu0
    %v292 = vand.u32 %v24, 4294901760
    %v293 = vsub.f32 %v24, %v292
    %v294 = vand.u32 %v293, 4294901760
    %v295 = vsub.f32 %v293, %v294
    %v296 = vand.u32 %v295, 4294901760
    %297 = vmatprep.subr.mxu0 %v296
    %v298 = vand.u32 %v23, 4294901760
    %v299 = vsub.f32 %v23, %v298
    %v300 = vand.u32 %v299, 4294901760
    %v301 = vsub.f32 %v299, %v300
    %v302 = vand.u32 %v301, 4294901760
    %303 = vmatpush1.msra.mxu0 %v302
    %v304 = vand.u32 %v26, 4294901760
    %v305 = vsub.f32 %v26, %v304
    %v306 = vand.u32 %v305, 4294901760
    %v307 = vsub.f32 %v305, %v306
    %v308 = vand.u32 %v307, 4294901760
    %309 = vmatprep.subr.mxu0 %v308
    %v310 = vand.u32 %v25, 4294901760
    %v311 = vsub.f32 %v25, %v310
    %v312 = vand.u32 %v311, 4294901760
    %v313 = vsub.f32 %v311, %v312
    %v314 = vand.u32 %v313, 4294901760
    %315 = vmatpush1.msra.mxu0 %v314
    %v316 = vand.u32 %v28, 4294901760
    %v317 = vsub.f32 %v28, %v316
    %v318 = vand.u32 %v317, 4294901760
    %v319 = vsub.f32 %v317, %v318
    %v320 = vand.u32 %v319, 4294901760
    %321 = vmatprep.subr.mxu0 %v320
    %v322 = vand.u32 %v27, 4294901760
    %v323 = vsub.f32 %v27, %v322
    %v324 = vand.u32 %v323, 4294901760
    %v325 = vsub.f32 %v323, %v324
    %v326 = vand.u32 %v325, 4294901760
    %327 = vmatpush1.msra.mxu0 %v326
    %v328 = vand.u32 %v30, 4294901760
    %v329 = vsub.f32 %v30, %v328
    %v330 = vand.u32 %v329, 4294901760
    %v331 = vsub.f32 %v329, %v330
    %v332 = vand.u32 %v331, 4294901760
    %333 = vmatprep.subr.mxu0 %v332
    %v334 = vand.u32 %v29, 4294901760
    %v335 = vsub.f32 %v29, %v334
    %v336 = vand.u32 %v335, 4294901760
    %v337 = vsub.f32 %v335, %v336
    %v338 = vand.u32 %v337, 4294901760
    %339 = vmatpush1.msra.mxu0 %v338
    %v340 = vand.u32 %v32, 4294901760
    %v341 = vsub.f32 %v32, %v340
    %v342 = vand.u32 %v341, 4294901760
    %v343 = vsub.f32 %v341, %v342
    %v344 = vand.u32 %v343, 4294901760
    %345 = vmatprep.subr.mxu0 %v344
    %v346 = vand.u32 %v31, 4294901760
    %v347 = vsub.f32 %v31, %v346
    %v348 = vand.u32 %v347, 4294901760
    %v349 = vsub.f32 %v347, %v348
    %v350 = vand.u32 %v349, 4294901760
    %351 = vmatpush1.msra.mxu0 %v350
    %v352 = vand.u32 %v34, 4294901760
    %v353 = vsub.f32 %v34, %v352
    %v354 = vand.u32 %v353, 4294901760
    %v355 = vsub.f32 %v353, %v354
    %v356 = vand.u32 %v355, 4294901760
    %357 = vmatprep.subr.mxu0 %v356
    %v358 = vand.u32 %v33, 4294901760
    %v359 = vsub.f32 %v33, %v358
    %v360 = vand.u32 %v359, 4294901760
    %v361 = vsub.f32 %v359, %v360
    %v362 = vand.u32 %v361, 4294901760
    %363 = vmatpush1.msra.mxu0 %v362
    %v364 = vand.u32 %v36, 4294901760
    %v365 = vsub.f32 %v36, %v364
    %v366 = vand.u32 %v365, 4294901760
    %v367 = vsub.f32 %v365, %v366
    %v368 = vand.u32 %v367, 4294901760
    %369 = vmatprep.subr.mxu0 %v368
    %v370 = vand.u32 %v35, 4294901760
    %v371 = vsub.f32 %v35, %v370
    %v372 = vand.u32 %v371, 4294901760
    %v373 = vsub.f32 %v371, %v372
    %v374 = vand.u32 %v373, 4294901760
    %375 = vmatpush1.msra.mxu0 %v374
    %v376 = vand.u32 %v38, 4294901760
    %v377 = vsub.f32 %v38, %v376
    %v378 = vand.u32 %v377, 4294901760
    %v379 = vsub.f32 %v377, %v378
    %v380 = vand.u32 %v379, 4294901760
    %381 = vmatprep.subr.mxu0 %v380
    %v382 = vand.u32 %v37, 4294901760
    %v383 = vsub.f32 %v37, %v382
    %v384 = vand.u32 %v383, 4294901760
    %v385 = vsub.f32 %v383, %v384
    %v386 = vand.u32 %v385, 4294901760
    %387 = vmatpush1.msra.mxu0 %v386
    %v388 = vand.u32 %v40, 4294901760
    %v389 = vsub.f32 %v40, %v388
    %v390 = vand.u32 %v389, 4294901760
    %v391 = vsub.f32 %v389, %v390
    %v392 = vand.u32 %v391, 4294901760
    %393 = vmatprep.subr.mxu0 %v392
    %v394 = vand.u32 %v39, 4294901760
    %v395 = vsub.f32 %v39, %v394
    %v396 = vand.u32 %v395, 4294901760
    %v397 = vsub.f32 %v395, %v396
    %v398 = vand.u32 %v397, 4294901760
    %399 = vmatpush1.msra.mxu0 %v398
    %v400 = vand.u32 %v42, 4294901760
    %v401 = vsub.f32 %v42, %v400
    %v402 = vand.u32 %v401, 4294901760
    %v403 = vsub.f32 %v401, %v402
    %v404 = vand.u32 %v403, 4294901760
    %405 = vmatprep.subr.mxu0 %v404
    %v406 = vand.u32 %v41, 4294901760
    %v407 = vsub.f32 %v41, %v406
    %v408 = vand.u32 %v407, 4294901760
    %v409 = vsub.f32 %v407, %v408
    %v410 = vand.u32 %v409, 4294901760
    %411 = vmatpush1.msra.mxu0 %v410
    %v412 = vand.u32 %v44, 4294901760
    %v413 = vsub.f32 %v44, %v412
    %v414 = vand.u32 %v413, 4294901760
    %v415 = vsub.f32 %v413, %v414
    %v416 = vand.u32 %v415, 4294901760
    %417 = vmatprep.subr.mxu0 %v416
    %v418 = vand.u32 %v43, 4294901760
    %v419 = vsub.f32 %v43, %v418
    %v420 = vand.u32 %v419, 4294901760
    %v421 = vsub.f32 %v419, %v420
    %v422 = vand.u32 %v421, 4294901760
    %423 = vmatpush1.msra.mxu0 %v422
    %v424 = vand.u32 %v46, 4294901760
    %v425 = vsub.f32 %v46, %v424
    %v426 = vand.u32 %v425, 4294901760
    %v427 = vsub.f32 %v425, %v426
    %v428 = vand.u32 %v427, 4294901760
    %429 = vmatprep.subr.mxu0 %v428
    %v430 = vand.u32 %v45, 4294901760
    %v431 = vsub.f32 %v45, %v430
    %v432 = vand.u32 %v431, 4294901760
    %v433 = vsub.f32 %v431, %v432
    %v434 = vand.u32 %v433, 4294901760
    %435 = vmatpush1.msra.mxu0 %v434
    %v436 = vand.u32 %v48, 4294901760
    %v437 = vsub.f32 %v48, %v436
    %v438 = vand.u32 %v437, 4294901760
    %v439 = vsub.f32 %v437, %v438
    %v440 = vand.u32 %v439, 4294901760
    %441 = vmatprep.subr.mxu0 %v440
    %v442 = vand.u32 %v47, 4294901760
    %v443 = vsub.f32 %v47, %v442
    %v444 = vand.u32 %v443, 4294901760
    %v445 = vsub.f32 %v443, %v444
    %v446 = vand.u32 %v445, 4294901760
    %447 = vmatpush1.msra.mxu0 %v446
    %v448 = vand.u32 %v50, 4294901760
    %v449 = vsub.f32 %v50, %v448
    %v450 = vand.u32 %v449, 4294901760
    %v451 = vsub.f32 %v449, %v450
    %v452 = vand.u32 %v451, 4294901760
    %453 = vmatprep.subr.mxu0 %v452
    %v454 = vand.u32 %v49, 4294901760
    %v455 = vsub.f32 %v49, %v454
    %v456 = vand.u32 %v455, 4294901760
    %v457 = vsub.f32 %v455, %v456
    %v458 = vand.u32 %v457, 4294901760
    %459 = vmatpush1.msra.mxu0 %v458
    %v460 = vand.u32 %v52, 4294901760
    %v461 = vsub.f32 %v52, %v460
    %v462 = vand.u32 %v461, 4294901760
    %v463 = vsub.f32 %v461, %v462
    %v464 = vand.u32 %v463, 4294901760
    %465 = vmatprep.subr.mxu0 %v464
    %v466 = vand.u32 %v51, 4294901760
    %v467 = vsub.f32 %v51, %v466
    %v468 = vand.u32 %v467, 4294901760
    %v469 = vsub.f32 %v467, %v468
    %v470 = vand.u32 %v469, 4294901760
    %471 = vmatpush1.msra.mxu0 %v470
    %v472 = vand.u32 %v54, 4294901760
    %v473 = vsub.f32 %v54, %v472
    %v474 = vand.u32 %v473, 4294901760
    %v475 = vsub.f32 %v473, %v474
    %v476 = vand.u32 %v475, 4294901760
    %477 = vmatprep.subr.mxu0 %v476
    %v478 = vand.u32 %v53, 4294901760
    %v479 = vsub.f32 %v53, %v478
    %v480 = vand.u32 %v479, 4294901760
    %v481 = vsub.f32 %v479, %v480
    %v482 = vand.u32 %v481, 4294901760
    %483 = vmatpush1.msra.mxu0 %v482
    %v484 = vand.u32 %v56, 4294901760
    %v485 = vsub.f32 %v56, %v484
    %v486 = vand.u32 %v485, 4294901760
    %v487 = vsub.f32 %v485, %v486
    %v488 = vand.u32 %v487, 4294901760
    %489 = vmatprep.subr.mxu0 %v488
    %v490 = vand.u32 %v55, 4294901760
    %v491 = vsub.f32 %v55, %v490
    %v492 = vand.u32 %v491, 4294901760
    %v493 = vsub.f32 %v491, %v492
    %v494 = vand.u32 %v493, 4294901760
    %495 = vmatpush1.msra.mxu0 %v494
    %v496 = vand.u32 %v58, 4294901760
    %v497 = vsub.f32 %v58, %v496
    %v498 = vand.u32 %v497, 4294901760
    %v499 = vsub.f32 %v497, %v498
    %v500 = vand.u32 %v499, 4294901760
    %501 = vmatprep.subr.mxu0 %v500
    %v502 = vand.u32 %v57, 4294901760
    %v503 = vsub.f32 %v57, %v502
    %v504 = vand.u32 %v503, 4294901760
    %v505 = vsub.f32 %v503, %v504
    %v506 = vand.u32 %v505, 4294901760
    %507 = vmatpush1.msra.mxu0 %v506
    %v508 = vand.u32 %v60, 4294901760
    %v509 = vsub.f32 %v60, %v508
    %v510 = vand.u32 %v509, 4294901760
    %v511 = vsub.f32 %v509, %v510
    %v512 = vand.u32 %v511, 4294901760
    %513 = vmatprep.subr.mxu0 %v512
    %v514 = vand.u32 %v59, 4294901760
    %v515 = vsub.f32 %v59, %v514
    %v516 = vand.u32 %v515, 4294901760
    %v517 = vsub.f32 %v515, %v516
    %v518 = vand.u32 %v517, 4294901760
    %519 = vmatpush1.msra.mxu0 %v518
    %v520 = vand.u32 %v62, 4294901760
    %v521 = vsub.f32 %v62, %v520
    %v522 = vand.u32 %v521, 4294901760
    %v523 = vsub.f32 %v521, %v522
    %v524 = vand.u32 %v523, 4294901760
    %525 = vmatprep.subr.mxu0 %v524
    %v526 = vand.u32 %v61, 4294901760
    %v527 = vsub.f32 %v61, %v526
    %v528 = vand.u32 %v527, 4294901760
    %v529 = vsub.f32 %v527, %v528
    %v530 = vand.u32 %v529, 4294901760
    %531 = vmatpush1.msra.mxu0 %v530
    %v532 = vand.u32 %v64, 4294901760
    %v533 = vsub.f32 %v64, %v532
    %v534 = vand.u32 %v533, 4294901760
    %v535 = vsub.f32 %v533, %v534
    %v536 = vand.u32 %v535, 4294901760
    %537 = vmatprep.subr.mxu0 %v536
    %v538 = vand.u32 %v63, 4294901760
    %v539 = vsub.f32 %v63, %v538
    %v540 = vand.u32 %v539, 4294901760
    %v541 = vsub.f32 %v539, %v540
    %v542 = vand.u32 %v541, 4294901760
    %543 = vmatpush1.msra.mxu0 %v542
    %v544 = vand.u32 %v66, 4294901760
    %v545 = vsub.f32 %v66, %v544
    %v546 = vand.u32 %v545, 4294901760
    %v547 = vsub.f32 %v545, %v546
    %v548 = vand.u32 %v547, 4294901760
    %549 = vmatprep.subr.mxu0 %v548
    %v550 = vand.u32 %v65, 4294901760
    %v551 = vsub.f32 %v65, %v550
    %v552 = vand.u32 %v551, 4294901760
    %v553 = vsub.f32 %v551, %v552
    %v554 = vand.u32 %v553, 4294901760
    %555 = vmatpush1.msra.mxu0 %v554
    %v556 = vand.u32 %v68, 4294901760
    %v557 = vsub.f32 %v68, %v556
    %v558 = vand.u32 %v557, 4294901760
    %v559 = vsub.f32 %v557, %v558
    %v560 = vand.u32 %v559, 4294901760
    %561 = vmatprep.subr.mxu0 %v560
    %v562 = vand.u32 %v67, 4294901760
    %v563 = vsub.f32 %v67, %v562
    %v564 = vand.u32 %v563, 4294901760
    %v565 = vsub.f32 %v563, %v564
    %v566 = vand.u32 %v565, 4294901760
    %567 = vmatpush1.msra.mxu0 %v566
    %v568 = vand.u32 %v70, 4294901760
    %v569 = vsub.f32 %v70, %v568
    %v570 = vand.u32 %v569, 4294901760
    %v571 = vsub.f32 %v569, %v570
    %v572 = vand.u32 %v571, 4294901760
    %573 = vmatprep.subr.mxu0 %v572
    %v574 = vand.u32 %v69, 4294901760
    %v575 = vsub.f32 %v69, %v574
    %v576 = vand.u32 %v575, 4294901760
    %v577 = vsub.f32 %v575, %v576
    %v578 = vand.u32 %v577, 4294901760
    %579 = vmatpush1.msra.mxu0 %v578
    %v580 = vand.u32 %v72, 4294901760
    %v581 = vsub.f32 %v72, %v580
    %v582 = vand.u32 %v581, 4294901760
    %v583 = vsub.f32 %v581, %v582
    %v584 = vand.u32 %v583, 4294901760
    %585 = vmatprep.subr.mxu0 %v584
    %v586 = vand.u32 %v71, 4294901760
    %v587 = vsub.f32 %v71, %v586
    %v588 = vand.u32 %v587, 4294901760
    %v589 = vsub.f32 %v587, %v588
    %v590 = vand.u32 %v589, 4294901760
    %591 = vmatpush1.msra.mxu0 %v590
    %v592 = vand.u32 %v74, 4294901760
    %v593 = vsub.f32 %v74, %v592
    %v594 = vand.u32 %v593, 4294901760
    %v595 = vsub.f32 %v593, %v594
    %v596 = vand.u32 %v595, 4294901760
    %597 = vmatprep.subr.mxu0 %v596
    %v598 = vand.u32 %v73, 4294901760
    %v599 = vsub.f32 %v73, %v598
    %v600 = vand.u32 %v599, 4294901760
    %v601 = vsub.f32 %v599, %v600
    %v602 = vand.u32 %v601, 4294901760
    %603 = vmatpush1.msra.mxu0 %v602
    %v604 = vand.u32 %v76, 4294901760
    %v605 = vsub.f32 %v76, %v604
    %v606 = vand.u32 %v605, 4294901760
    %v607 = vsub.f32 %v605, %v606
    %v608 = vand.u32 %v607, 4294901760
    %609 = vmatprep.subr.mxu0 %v608
    %v610 = vand.u32 %v75, 4294901760
    %v611 = vsub.f32 %v75, %v610
    %v612 = vand.u32 %v611, 4294901760
    %v613 = vsub.f32 %v611, %v612
    %v614 = vand.u32 %v613, 4294901760
    %615 = vmatpush1.msra.mxu0 %v614
    %v616 = vand.u32 %v78, 4294901760
    %v617 = vsub.f32 %v78, %v616
    %v618 = vand.u32 %v617, 4294901760
    %v619 = vsub.f32 %v617, %v618
    %v620 = vand.u32 %v619, 4294901760
    %621 = vmatprep.subr.mxu0 %v620
    %v622 = vand.u32 %v77, 4294901760
    %v623 = vsub.f32 %v77, %v622
    %v624 = vand.u32 %v623, 4294901760
    %v625 = vsub.f32 %v623, %v624
    %v626 = vand.u32 %v625, 4294901760
    %627 = vmatpush1.msra.mxu0 %v626
    %v628 = vand.u32 %v80, 4294901760
    %v629 = vsub.f32 %v80, %v628
    %v630 = vand.u32 %v629, 4294901760
    %v631 = vsub.f32 %v629, %v630
    %v632 = vand.u32 %v631, 4294901760
    %633 = vmatprep.subr.mxu0 %v632
    %v634 = vand.u32 %v79, 4294901760
    %v635 = vsub.f32 %v79, %v634
    %v636 = vand.u32 %v635, 4294901760
    %v637 = vsub.f32 %v635, %v636
    %v638 = vand.u32 %v637, 4294901760
    %639 = vmatpush1.msra.mxu0 %v638
    %v640 = vand.u32 %v82, 4294901760
    %v641 = vsub.f32 %v82, %v640
    %v642 = vand.u32 %v641, 4294901760
    %v643 = vsub.f32 %v641, %v642
    %v644 = vand.u32 %v643, 4294901760
    %645 = vmatprep.subr.mxu0 %v644
    %v646 = vand.u32 %v81, 4294901760
    %v647 = vsub.f32 %v81, %v646
    %v648 = vand.u32 %v647, 4294901760
    %v649 = vsub.f32 %v647, %v648
    %v650 = vand.u32 %v649, 4294901760
    %651 = vmatpush1.msra.mxu0 %v650
    %v652 = vand.u32 %v84, 4294901760
    %v653 = vsub.f32 %v84, %v652
    %v654 = vand.u32 %v653, 4294901760
    %v655 = vsub.f32 %v653, %v654
    %v656 = vand.u32 %v655, 4294901760
    %657 = vmatprep.subr.mxu0 %v656
    %v658 = vand.u32 %v83, 4294901760
    %v659 = vsub.f32 %v83, %v658
    %v660 = vand.u32 %v659, 4294901760
    %v661 = vsub.f32 %v659, %v660
    %v662 = vand.u32 %v661, 4294901760
    %663 = vmatpush1.msra.mxu0 %v662
    %v664 = vand.u32 %v86, 4294901760
    %v665 = vsub.f32 %v86, %v664
    %v666 = vand.u32 %v665, 4294901760
    %v667 = vsub.f32 %v665, %v666
    %v668 = vand.u32 %v667, 4294901760
    %669 = vmatprep.subr.mxu0 %v668
    %v670 = vand.u32 %v85, 4294901760
    %v671 = vsub.f32 %v85, %v670
    %v672 = vand.u32 %v671, 4294901760
    %v673 = vsub.f32 %v671, %v672
    %v674 = vand.u32 %v673, 4294901760
    %675 = vmatpush1.msra.mxu0 %v674
    %v676 = vand.u32 %v16, 4294901760
    %677 = vmatprep.mubr.f32.mxu0 %v676
    %v678 = vand.u32 %v15, 4294901760
    %679 = vmatmul.mubr.f32.gmra.mrb[0].mxu0 %v678
    %v680 = vpop.f32.mrb[0].mxu0
    %v681 = vadd.f32 %v240, %v680
    %v682 = vpop.f32.mrb[0].mxu0
    %v683 = vadd.f32 %v242, %v682
    %v684 = vand.u32 %v18, 4294901760
    %685 = vmatprep.mubr.f32.mxu0 %v684
    %v686 = vand.u32 %v17, 4294901760
    %687 = vmatmul.mubr.f32.gmra.mrb[0].mxu0 %v686
    %v688 = vpop.f32.mrb[0].mxu0
    %v689 = vadd.f32 %v256, %v688
    %v690 = vpop.f32.mrb[0].mxu0
    %v691 = vadd.f32 %v258, %v690
    %v692 = vand.u32 %v20, 4294901760
    %693 = vmatprep.mubr.f32.mxu0 %v692
    %v694 = vand.u32 %v19, 4294901760
    %695 = vmatmul.mubr.f32.gmra.mrb[0].mxu0 %v694
    %v696 = vpop.f32.mrb[0].mxu0
    %v697 = vadd.f32 %v272, %v696
    %v698 = vpop.f32.mrb[0].mxu0
    %v699 = vadd.f32 %v274, %v698
    %v700 = vand.u32 %v22, 4294901760
    %701 = vmatprep.mubr.f32.mxu0 %v700
    %v702 = vand.u32 %v21, 4294901760
    %703 = vmatmul.mubr.f32.gmra.mrb[0].mxu0 %v702
    %v704 = vpop.f32.mrb[0].mxu0
    %v705 = vadd.f32 %v288, %v704
    %v706 = vpop.f32.mrb[0].mxu0
    %v707 = vadd.f32 %v290, %v706
    %708 = vdwg.mxu0
    %v709 = vand.u32 %v24, 4294901760
    %v710 = vsub.f32 %v24, %v709
    %711 = vmatprep.subr.mxu0 %v710
    %v712 = vand.u32 %v23, 4294901760
    %v713 = vsub.f32 %v23, %v712
    %714 = vmatpush1.msra.mxu0 %v713
    %v715 = vand.u32 %v26, 4294901760
    %v716 = vsub.f32 %v26, %v715
    %717 = vmatprep.subr.mxu0 %v716
    %v718 = vand.u32 %v25, 4294901760
    %v719 = vsub.f32 %v25, %v718
    %720 = vmatpush1.msra.mxu0 %v719
    %v721 = vand.u32 %v28, 4294901760
    %v722 = vsub.f32 %v28, %v721
    %723 = vmatprep.subr.mxu0 %v722
    %v724 = vand.u32 %v27, 4294901760
    %v725 = vsub.f32 %v27, %v724
    %726 = vmatpush1.msra.mxu0 %v725
    %v727 = vand.u32 %v30, 4294901760
    %v728 = vsub.f32 %v30, %v727
    %729 = vmatprep.subr.mxu0 %v728
    %v730 = vand.u32 %v29, 4294901760
    %v731 = vsub.f32 %v29, %v730
    %732 = vmatpush1.msra.mxu0 %v731
    %v733 = vand.u32 %v32, 4294901760
    %v734 = vsub.f32 %v32, %v733
    %735 = vmatprep.subr.mxu0 %v734
    %v736 = vand.u32 %v31, 4294901760
    %v737 = vsub.f32 %v31, %v736
    %738 = vmatpush1.msra.mxu0 %v737
    %v739 = vand.u32 %v34, 4294901760
    %v740 = vsub.f32 %v34, %v739
    %741 = vmatprep.subr.mxu0 %v740
    %v742 = vand.u32 %v33, 4294901760
    %v743 = vsub.f32 %v33, %v742
    %744 = vmatpush1.msra.mxu0 %v743
    %v745 = vand.u32 %v36, 4294901760
    %v746 = vsub.f32 %v36, %v745
    %747 = vmatprep.subr.mxu0 %v746
    %v748 = vand.u32 %v35, 4294901760
    %v749 = vsub.f32 %v35, %v748
    %750 = vmatpush1.msra.mxu0 %v749
    %v751 = vand.u32 %v38, 4294901760
    %v752 = vsub.f32 %v38, %v751
    %753 = vmatprep.subr.mxu0 %v752
    %v754 = vand.u32 %v37, 4294901760
    %v755 = vsub.f32 %v37, %v754
    %756 = vmatpush1.msra.mxu0 %v755
    %v757 = vand.u32 %v40, 4294901760
    %v758 = vsub.f32 %v40, %v757
    %759 = vmatprep.subr.mxu0 %v758
    %v760 = vand.u32 %v39, 4294901760
    %v761 = vsub.f32 %v39, %v760
    %762 = vmatpush1.msra.mxu0 %v761
    %v763 = vand.u32 %v42, 4294901760
    %v764 = vsub.f32 %v42, %v763
    %765 = vmatprep.subr.mxu0 %v764
    %v766 = vand.u32 %v41, 4294901760
    %v767 = vsub.f32 %v41, %v766
    %768 = vmatpush1.msra.mxu0 %v767
    %v769 = vand.u32 %v44, 4294901760
    %v770 = vsub.f32 %v44, %v769
    %771 = vmatprep.subr.mxu0 %v770
    %v772 = vand.u32 %v43, 4294901760
    %v773 = vsub.f32 %v43, %v772
    %774 = vmatpush1.msra.mxu0 %v773
    %v775 = vand.u32 %v46, 4294901760
    %v776 = vsub.f32 %v46, %v775
    %777 = vmatprep.subr.mxu0 %v776
    %v778 = vand.u32 %v45, 4294901760
    %v779 = vsub.f32 %v45, %v778
    %780 = vmatpush1.msra.mxu0 %v779
    %v781 = vand.u32 %v48, 4294901760
    %v782 = vsub.f32 %v48, %v781
    %783 = vmatprep.subr.mxu0 %v782
    %v784 = vand.u32 %v47, 4294901760
    %v785 = vsub.f32 %v47, %v784
    %786 = vmatpush1.msra.mxu0 %v785
    %v787 = vand.u32 %v50, 4294901760
    %v788 = vsub.f32 %v50, %v787
    %789 = vmatprep.subr.mxu0 %v788
    %v790 = vand.u32 %v49, 4294901760
    %v791 = vsub.f32 %v49, %v790
    %792 = vmatpush1.msra.mxu0 %v791
    %v793 = vand.u32 %v52, 4294901760
    %v794 = vsub.f32 %v52, %v793
    %795 = vmatprep.subr.mxu0 %v794
    %v796 = vand.u32 %v51, 4294901760
    %v797 = vsub.f32 %v51, %v796
    %798 = vmatpush1.msra.mxu0 %v797
    %v799 = vand.u32 %v54, 4294901760
    %v800 = vsub.f32 %v54, %v799
    %801 = vmatprep.subr.mxu0 %v800
    %v802 = vand.u32 %v53, 4294901760
    %v803 = vsub.f32 %v53, %v802
    %804 = vmatpush1.msra.mxu0 %v803
    %v805 = vand.u32 %v56, 4294901760
    %v806 = vsub.f32 %v56, %v805
    %807 = vmatprep.subr.mxu0 %v806
    %v808 = vand.u32 %v55, 4294901760
    %v809 = vsub.f32 %v55, %v808
    %810 = vmatpush1.msra.mxu0 %v809
    %v811 = vand.u32 %v58, 4294901760
    %v812 = vsub.f32 %v58, %v811
    %813 = vmatprep.subr.mxu0 %v812
    %v814 = vand.u32 %v57, 4294901760
    %v815 = vsub.f32 %v57, %v814
    %816 = vmatpush1.msra.mxu0 %v815
    %v817 = vand.u32 %v60, 4294901760
    %v818 = vsub.f32 %v60, %v817
    %819 = vmatprep.subr.mxu0 %v818
    %v820 = vand.u32 %v59, 4294901760
    %v821 = vsub.f32 %v59, %v820
    %822 = vmatpush1.msra.mxu0 %v821
    %v823 = vand.u32 %v62, 4294901760
    %v824 = vsub.f32 %v62, %v823
    %825 = vmatprep.subr.mxu0 %v824
    %v826 = vand.u32 %v61, 4294901760
    %v827 = vsub.f32 %v61, %v826
    %828 = vmatpush1.msra.mxu0 %v827
    %v829 = vand.u32 %v64, 4294901760
    %v830 = vsub.f32 %v64, %v829
    %831 = vmatprep.subr.mxu0 %v830
    %v832 = vand.u32 %v63, 4294901760
    %v833 = vsub.f32 %v63, %v832
    %834 = vmatpush1.msra.mxu0 %v833
    %v835 = vand.u32 %v66, 4294901760
    %v836 = vsub.f32 %v66, %v835
    %837 = vmatprep.subr.mxu0 %v836
    %v838 = vand.u32 %v65, 4294901760
    %v839 = vsub.f32 %v65, %v838
    %840 = vmatpush1.msra.mxu0 %v839
    %v841 = vand.u32 %v68, 4294901760
    %v842 = vsub.f32 %v68, %v841
    %843 = vmatprep.subr.mxu0 %v842
    %v844 = vand.u32 %v67, 4294901760
    %v845 = vsub.f32 %v67, %v844
    %846 = vmatpush1.msra.mxu0 %v845
    %v847 = vand.u32 %v70, 4294901760
    %v848 = vsub.f32 %v70, %v847
    %849 = vmatprep.subr.mxu0 %v848
    %v850 = vand.u32 %v69, 4294901760
    %v851 = vsub.f32 %v69, %v850
    %852 = vmatpush1.msra.mxu0 %v851
    %v853 = vand.u32 %v72, 4294901760
    %v854 = vsub.f32 %v72, %v853
    %855 = vmatprep.subr.mxu0 %v854
    %v856 = vand.u32 %v71, 4294901760
    %v857 = vsub.f32 %v71, %v856
    %858 = vmatpush1.msra.mxu0 %v857
    %v859 = vand.u32 %v74, 4294901760
    %v860 = vsub.f32 %v74, %v859
    %861 = vmatprep.subr.mxu0 %v860
    %v862 = vand.u32 %v73, 4294901760
    %v863 = vsub.f32 %v73, %v862
    %864 = vmatpush1.msra.mxu0 %v863
    %v865 = vand.u32 %v76, 4294901760
    %v866 = vsub.f32 %v76, %v865
    %867 = vmatprep.subr.mxu0 %v866
    %v868 = vand.u32 %v75, 4294901760
    %v869 = vsub.f32 %v75, %v868
    %870 = vmatpush1.msra.mxu0 %v869
    %v871 = vand.u32 %v78, 4294901760
    %v872 = vsub.f32 %v78, %v871
    %873 = vmatprep.subr.mxu0 %v872
    %v874 = vand.u32 %v77, 4294901760
    %v875 = vsub.f32 %v77, %v874
    %876 = vmatpush1.msra.mxu0 %v875
    %v877 = vand.u32 %v80, 4294901760
    %v878 = vsub.f32 %v80, %v877
    %879 = vmatprep.subr.mxu0 %v878
    %v880 = vand.u32 %v79, 4294901760
    %v881 = vsub.f32 %v79, %v880
    %882 = vmatpush1.msra.mxu0 %v881
    %v883 = vand.u32 %v82, 4294901760
    %v884 = vsub.f32 %v82, %v883
    %885 = vmatprep.subr.mxu0 %v884
    %v886 = vand.u32 %v81, 4294901760
    %v887 = vsub.f32 %v81, %v886
    %888 = vmatpush1.msra.mxu0 %v887
    %v889 = vand.u32 %v84, 4294901760
    %v890 = vsub.f32 %v84, %v889
    %891 = vmatprep.subr.mxu0 %v890
    %v892 = vand.u32 %v83, 4294901760
    %v893 = vsub.f32 %v83, %v892
    %894 = vmatpush1.msra.mxu0 %v893
    %v895 = vand.u32 %v86, 4294901760
    %v896 = vsub.f32 %v86, %v895
    %897 = vmatprep.subr.mxu0 %v896
    %v898 = vand.u32 %v85, 4294901760
    %v899 = vsub.f32 %v85, %v898
    %900 = vmatpush1.msra.mxu0 %v899
    %v901 = vand.u32 %v16, 4294901760
    %v902 = vsub.f32 %v16, %v901
    %903 = vmatprep.mubr.f32.mxu0 %v902
    %v904 = vand.u32 %v15, 4294901760
    %v905 = vsub.f32 %v15, %v904
    %906 = vmatmul.mubr.f32.gmra.mrb[0].mxu0 %v905
    %v907 = vpop.f32.mrb[0].mxu0
    %v908 = vadd.f32 %v681, %v907
    %v909 = vpop.f32.mrb[0].mxu0
    %v910 = vadd.f32 %v683, %v909
    %v911 = vand.u32 %v18, 4294901760
    %v912 = vsub.f32 %v18, %v911
    %913 = vmatprep.mubr.f32.mxu0 %v912
    %v914 = vand.u32 %v17, 4294901760
    %v915 = vsub.f32 %v17, %v914
    %916 = vmatmul.mubr.f32.gmra.mrb[0].mxu0 %v915
    %v917 = vpop.f32.mrb[0].mxu0
    %v918 = vadd.f32 %v689, %v917
    %v919 = vpop.f32.mrb[0].mxu0
    %v920 = vadd.f32 %v691, %v919
    %v921 = vand.u32 %v20, 4294901760
    %v922 = vsub.f32 %v20, %v921
    %923 = vmatprep.mubr.f32.mxu0 %v922
    %v924 = vand.u32 %v19, 4294901760
    %v925 = vsub.f32 %v19, %v924
    %926 = vmatmul.mubr.f32.gmra.mrb[0].mxu0 %v925
    %v927 = vpop.f32.mrb[0].mxu0
    %v928 = vadd.f32 %v697, %v927
    %v929 = vpop.f32.mrb[0].mxu0
    %v930 = vadd.f32 %v699, %v929
    %v931 = vand.u32 %v22, 4294901760
    %v932 = vsub.f32 %v22, %v931
    %933 = vmatprep.mubr.f32.mxu0 %v932
    %v934 = vand.u32 %v21, 4294901760
    %v935 = vsub.f32 %v21, %v934
    %936 = vmatmul.mubr.f32.gmra.mrb[0].mxu0 %v935
    %v937 = vpop.f32.mrb[0].mxu0
    %v938 = vadd.f32 %v705, %v937
    %v939 = vpop.f32.mrb[0].mxu0
    %v940 = vadd.f32 %v707, %v939
    %941 = vdwg.mxu0
    %v942 = vand.u32 %v24, 4294901760
    %943 = vmatprep.subr.mxu0 %v942
    %v944 = vand.u32 %v23, 4294901760
    %945 = vmatpush1.msra.mxu0 %v944
    %v946 = vand.u32 %v26, 4294901760
    %947 = vmatprep.subr.mxu0 %v946
    %v948 = vand.u32 %v25, 4294901760
    %949 = vmatpush1.msra.mxu0 %v948
    %v950 = vand.u32 %v28, 4294901760
    %951 = vmatprep.subr.mxu0 %v950
    %v952 = vand.u32 %v27, 4294901760
    %953 = vmatpush1.msra.mxu0 %v952
    %v954 = vand.u32 %v30, 4294901760
    %955 = vmatprep.subr.mxu0 %v954
    %v956 = vand.u32 %v29, 4294901760
    %957 = vmatpush1.msra.mxu0 %v956
    %v958 = vand.u32 %v32, 4294901760
    %959 = vmatprep.subr.mxu0 %v958
    %v960 = vand.u32 %v31, 4294901760
    %961 = vmatpush1.msra.mxu0 %v960
    %v962 = vand.u32 %v34, 4294901760
    %963 = vmatprep.subr.mxu0 %v962
    %v964 = vand.u32 %v33, 4294901760
    %965 = vmatpush1.msra.mxu0 %v964
    %v966 = vand.u32 %v36, 4294901760
    %967 = vmatprep.subr.mxu0 %v966
    %v968 = vand.u32 %v35, 4294901760
    %969 = vmatpush1.msra.mxu0 %v968
    %v970 = vand.u32 %v38, 4294901760
    %971 = vmatprep.subr.mxu0 %v970
    %v972 = vand.u32 %v37, 4294901760
    %973 = vmatpush1.msra.mxu0 %v972
    %v974 = vand.u32 %v40, 4294901760
    %975 = vmatprep.subr.mxu0 %v974
    %v976 = vand.u32 %v39, 4294901760
    %977 = vmatpush1.msra.mxu0 %v976
    %v978 = vand.u32 %v42, 4294901760
    %979 = vmatprep.subr.mxu0 %v978
    %v980 = vand.u32 %v41, 4294901760
    %981 = vmatpush1.msra.mxu0 %v980
    %v982 = vand.u32 %v44, 4294901760
    %983 = vmatprep.subr.mxu0 %v982
    %v984 = vand.u32 %v43, 4294901760
    %985 = vmatpush1.msra.mxu0 %v984
    %v986 = vand.u32 %v46, 4294901760
    %987 = vmatprep.subr.mxu0 %v986
    %v988 = vand.u32 %v45, 4294901760
    %989 = vmatpush1.msra.mxu0 %v988
    %v990 = vand.u32 %v48, 4294901760
    %991 = vmatprep.subr.mxu0 %v990
    %v992 = vand.u32 %v47, 4294901760
    %993 = vmatpush1.msra.mxu0 %v992
    %v994 = vand.u32 %v50, 4294901760
    %995 = vmatprep.subr.mxu0 %v994
    %v996 = vand.u32 %v49, 4294901760
    %997 = vmatpush1.msra.mxu0 %v996
    %v998 = vand.u32 %v52, 4294901760
    %999 = vmatprep.subr.mxu0 %v998
    %v1000 = vand.u32 %v51, 4294901760
    %1001 = vmatpush1.msra.mxu0 %v1000
    %v1002 = vand.u32 %v54, 4294901760
    %1003 = vmatprep.subr.mxu0 %v1002
    %v1004 = vand.u32 %v53, 4294901760
    %1005 = vmatpush1.msra.mxu0 %v1004
    %v1006 = vand.u32 %v56, 4294901760
    %1007 = vmatprep.subr.mxu0 %v1006
    %v1008 = vand.u32 %v55, 4294901760
    %1009 = vmatpush1.msra.mxu0 %v1008
    %v1010 = vand.u32 %v58, 4294901760
    %1011 = vmatprep.subr.mxu0 %v1010
    %v1012 = vand.u32 %v57, 4294901760
    %1013 = vmatpush1.msra.mxu0 %v1012
    %v1014 = vand.u32 %v60, 4294901760
    %1015 = vmatprep.subr.mxu0 %v1014
    %v1016 = vand.u32 %v59, 4294901760
    %1017 = vmatpush1.msra.mxu0 %v1016
    %v1018 = vand.u32 %v62, 4294901760
    %1019 = vmatprep.subr.mxu0 %v1018
    %v1020 = vand.u32 %v61, 4294901760
    %1021 = vmatpush1.msra.mxu0 %v1020
    %v1022 = vand.u32 %v64, 4294901760
    %1023 = vmatprep.subr.mxu0 %v1022
    %v1024 = vand.u32 %v63, 4294901760
    %1025 = vmatpush1.msra.mxu0 %v1024
    %v1026 = vand.u32 %v66, 4294901760
    %1027 = vmatprep.subr.mxu0 %v1026
    %v1028 = vand.u32 %v65, 4294901760
    %1029 = vmatpush1.msra.mxu0 %v1028
    %v1030 = vand.u32 %v68, 4294901760
    %1031 = vmatprep.subr.mxu0 %v1030
    %v1032 = vand.u32 %v67, 4294901760
    %1033 = vmatpush1.msra.mxu0 %v1032
    %v1034 = vand.u32 %v70, 4294901760
    %1035 = vmatprep.subr.mxu0 %v1034
    %v1036 = vand.u32 %v69, 4294901760
    %1037 = vmatpush1.msra.mxu0 %v1036
    %v1038 = vand.u32 %v72, 4294901760
    %1039 = vmatprep.subr.mxu0 %v1038
    %v1040 = vand.u32 %v71, 4294901760
    %1041 = vmatpush1.msra.mxu0 %v1040
    %v1042 = vand.u32 %v74, 4294901760
    %1043 = vmatprep.subr.mxu0 %v1042
    %v1044 = vand.u32 %v73, 4294901760
    %1045 = vmatpush1.msra.mxu0 %v1044
    %v1046 = vand.u32 %v76, 4294901760
    %1047 = vmatprep.subr.mxu0 %v1046
    %v1048 = vand.u32 %v75, 4294901760
    %1049 = vmatpush1.msra.mxu0 %v1048
    %v1050 = vand.u32 %v78, 4294901760
    %1051 = vmatprep.subr.mxu0 %v1050
    %v1052 = vand.u32 %v77, 4294901760
    %1053 = vmatpush1.msra.mxu0 %v1052
    %v1054 = vand.u32 %v80, 4294901760
    %1055 = vmatprep.subr.mxu0 %v1054
    %v1056 = vand.u32 %v79, 4294901760
    %1057 = vmatpush1.msra.mxu0 %v1056
    %v1058 = vand.u32 %v82, 4294901760
    %1059 = vmatprep.subr.mxu0 %v1058
    %v1060 = vand.u32 %v81, 4294901760
    %1061 = vmatpush1.msra.mxu0 %v1060
    %v1062 = vand.u32 %v84, 4294901760
    %1063 = vmatprep.subr.mxu0 %v1062
    %v1064 = vand.u32 %v83, 4294901760
    %1065 = vmatpush1.msra.mxu0 %v1064
    %v1066 = vand.u32 %v86, 4294901760
    %1067 = vmatprep.subr.mxu0 %v1066
    %v1068 = vand.u32 %v85, 4294901760
    %1069 = vmatpush1.msra.mxu0 %v1068
    %v1070 = vand.u32 %v16, 4294901760
    %v1071 = vsub.f32 %v16, %v1070
    %v1072 = vand.u32 %v1071, 4294901760
    %1073 = vmatprep.mubr.f32.mxu0 %v1072
    %v1074 = vand.u32 %v15, 4294901760
    %v1075 = vsub.f32 %v15, %v1074
    %v1076 = vand.u32 %v1075, 4294901760
    %1077 = vmatmul.mubr.f32.gmra.mrb[0].mxu0 %v1076
    %v1078 = vpop.f32.mrb[0].mxu0
    %v1079 = vadd.f32 %v908, %v1078
    %v1080 = vpop.f32.mrb[0].mxu0
    %v1081 = vadd.f32 %v910, %v1080
    %v1082 = vand.u32 %v18, 4294901760
    %v1083 = vsub.f32 %v18, %v1082
    %v1084 = vand.u32 %v1083, 4294901760
    %1085 = vmatprep.mubr.f32.mxu0 %v1084
    %v1086 = vand.u32 %v17, 4294901760
    %v1087 = vsub.f32 %v17, %v1086
    %v1088 = vand.u32 %v1087, 4294901760
    %1089 = vmatmul.mubr.f32.gmra.mrb[0].mxu0 %v1088
    %v1090 = vpop.f32.mrb[0].mxu0
    %v1091 = vadd.f32 %v918, %v1090
    %v1092 = vpop.f32.mrb[0].mxu0
    %v1093 = vadd.f32 %v920, %v1092
    %v1094 = vand.u32 %v20, 4294901760
    %v1095 = vsub.f32 %v20, %v1094
    %v1096 = vand.u32 %v1095, 4294901760
    %1097 = vmatprep.mubr.f32.mxu0 %v1096
    %v1098 = vand.u32 %v19, 4294901760
    %v1099 = vsub.f32 %v19, %v1098
    %v1100 = vand.u32 %v1099, 4294901760
    %1101 = vmatmul.mubr.f32.gmra.mrb[0].mxu0 %v1100
    %v1102 = vpop.f32.mrb[0].mxu0
    %v1103 = vadd.f32 %v928, %v1102
    %v1104 = vpop.f32.mrb[0].mxu0
    %v1105 = vadd.f32 %v930, %v1104
    %v1106 = vand.u32 %v22, 4294901760
    %v1107 = vsub.f32 %v22, %v1106
    %v1108 = vand.u32 %v1107, 4294901760
    %1109 = vmatprep.mubr.f32.mxu0 %v1108
    %v1110 = vand.u32 %v21, 4294901760
    %v1111 = vsub.f32 %v21, %v1110
    %v1112 = vand.u32 %v1111, 4294901760
    %1113 = vmatmul.mubr.f32.gmra.mrb[0].mxu0 %v1112
    %v1114 = vpop.f32.mrb[0].mxu0
    %v1115 = vadd.f32 %v938, %v1114
    %v1116 = vpop.f32.mrb[0].mxu0
    %v1117 = vadd.f32 %v940, %v1116
    %1118 = vdwg.mxu0
    %v1119 = vand.u32 %v24, 4294901760
    %v1120 = vsub.f32 %v24, %v1119
    %v1121 = vand.u32 %v1120, 4294901760
    %1122 = vmatprep.subr.mxu0 %v1121
    %v1123 = vand.u32 %v23, 4294901760
    %v1124 = vsub.f32 %v23, %v1123
    %v1125 = vand.u32 %v1124, 4294901760
    %1126 = vmatpush1.msra.mxu0 %v1125
    %v1127 = vand.u32 %v26, 4294901760
    %v1128 = vsub.f32 %v26, %v1127
    %v1129 = vand.u32 %v1128, 4294901760
    %1130 = vmatprep.subr.mxu0 %v1129
    %v1131 = vand.u32 %v25, 4294901760
    %v1132 = vsub.f32 %v25, %v1131
    %v1133 = vand.u32 %v1132, 4294901760
    %1134 = vmatpush1.msra.mxu0 %v1133
    %v1135 = vand.u32 %v28, 4294901760
    %v1136 = vsub.f32 %v28, %v1135
    %v1137 = vand.u32 %v1136, 4294901760
    %1138 = vmatprep.subr.mxu0 %v1137
    %v1139 = vand.u32 %v27, 4294901760
    %v1140 = vsub.f32 %v27, %v1139
    %v1141 = vand.u32 %v1140, 4294901760
    %1142 = vmatpush1.msra.mxu0 %v1141
    %v1143 = vand.u32 %v30, 4294901760
    %v1144 = vsub.f32 %v30, %v1143
    %v1145 = vand.u32 %v1144, 4294901760
    %1146 = vmatprep.subr.mxu0 %v1145
    %v1147 = vand.u32 %v29, 4294901760
    %v1148 = vsub.f32 %v29, %v1147
    %v1149 = vand.u32 %v1148, 4294901760
    %1150 = vmatpush1.msra.mxu0 %v1149
    %v1151 = vand.u32 %v32, 4294901760
    %v1152 = vsub.f32 %v32, %v1151
    %v1153 = vand.u32 %v1152, 4294901760
    %1154 = vmatprep.subr.mxu0 %v1153
    %v1155 = vand.u32 %v31, 4294901760
    %v1156 = vsub.f32 %v31, %v1155
    %v1157 = vand.u32 %v1156, 4294901760
    %1158 = vmatpush1.msra.mxu0 %v1157
    %v1159 = vand.u32 %v34, 4294901760
    %v1160 = vsub.f32 %v34, %v1159
    %v1161 = vand.u32 %v1160, 4294901760
    %1162 = vmatprep.subr.mxu0 %v1161
    %v1163 = vand.u32 %v33, 4294901760
    %v1164 = vsub.f32 %v33, %v1163
    %v1165 = vand.u32 %v1164, 4294901760
    %1166 = vmatpush1.msra.mxu0 %v1165
    %v1167 = vand.u32 %v36, 4294901760
    %v1168 = vsub.f32 %v36, %v1167
    %v1169 = vand.u32 %v1168, 4294901760
    %1170 = vmatprep.subr.mxu0 %v1169
    %v1171 = vand.u32 %v35, 4294901760
    %v1172 = vsub.f32 %v35, %v1171
    %v1173 = vand.u32 %v1172, 4294901760
    %1174 = vmatpush1.msra.mxu0 %v1173
    %v1175 = vand.u32 %v38, 4294901760
    %v1176 = vsub.f32 %v38, %v1175
    %v1177 = vand.u32 %v1176, 4294901760
    %1178 = vmatprep.subr.mxu0 %v1177
    %v1179 = vand.u32 %v37, 4294901760
    %v1180 = vsub.f32 %v37, %v1179
    %v1181 = vand.u32 %v1180, 4294901760
    %1182 = vmatpush1.msra.mxu0 %v1181
    %v1183 = vand.u32 %v40, 4294901760
    %v1184 = vsub.f32 %v40, %v1183
    %v1185 = vand.u32 %v1184, 4294901760
    %1186 = vmatprep.subr.mxu0 %v1185
    %v1187 = vand.u32 %v39, 4294901760
    %v1188 = vsub.f32 %v39, %v1187
    %v1189 = vand.u32 %v1188, 4294901760
    %1190 = vmatpush1.msra.mxu0 %v1189
    %v1191 = vand.u32 %v42, 4294901760
    %v1192 = vsub.f32 %v42, %v1191
    %v1193 = vand.u32 %v1192, 4294901760
    %1194 = vmatprep.subr.mxu0 %v1193
    %v1195 = vand.u32 %v41, 4294901760
    %v1196 = vsub.f32 %v41, %v1195
    %v1197 = vand.u32 %v1196, 4294901760
    %1198 = vmatpush1.msra.mxu0 %v1197
    %v1199 = vand.u32 %v44, 4294901760
    %v1200 = vsub.f32 %v44, %v1199
    %v1201 = vand.u32 %v1200, 4294901760
    %1202 = vmatprep.subr.mxu0 %v1201
    %v1203 = vand.u32 %v43, 4294901760
    %v1204 = vsub.f32 %v43, %v1203
    %v1205 = vand.u32 %v1204, 4294901760
    %1206 = vmatpush1.msra.mxu0 %v1205
    %v1207 = vand.u32 %v46, 4294901760
    %v1208 = vsub.f32 %v46, %v1207
    %v1209 = vand.u32 %v1208, 4294901760
    %1210 = vmatprep.subr.mxu0 %v1209
    %v1211 = vand.u32 %v45, 4294901760
    %v1212 = vsub.f32 %v45, %v1211
    %v1213 = vand.u32 %v1212, 4294901760
    %1214 = vmatpush1.msra.mxu0 %v1213
    %v1215 = vand.u32 %v48, 4294901760
    %v1216 = vsub.f32 %v48, %v1215
    %v1217 = vand.u32 %v1216, 4294901760
    %1218 = vmatprep.subr.mxu0 %v1217
    %v1219 = vand.u32 %v47, 4294901760
    %v1220 = vsub.f32 %v47, %v1219
    %v1221 = vand.u32 %v1220, 4294901760
    %1222 = vmatpush1.msra.mxu0 %v1221
    %v1223 = vand.u32 %v50, 4294901760
    %v1224 = vsub.f32 %v50, %v1223
    %v1225 = vand.u32 %v1224, 4294901760
    %1226 = vmatprep.subr.mxu0 %v1225
    %v1227 = vand.u32 %v49, 4294901760
    %v1228 = vsub.f32 %v49, %v1227
    %v1229 = vand.u32 %v1228, 4294901760
    %1230 = vmatpush1.msra.mxu0 %v1229
    %v1231 = vand.u32 %v52, 4294901760
    %v1232 = vsub.f32 %v52, %v1231
    %v1233 = vand.u32 %v1232, 4294901760
    %1234 = vmatprep.subr.mxu0 %v1233
    %v1235 = vand.u32 %v51, 4294901760
    %v1236 = vsub.f32 %v51, %v1235
    %v1237 = vand.u32 %v1236, 4294901760
    %1238 = vmatpush1.msra.mxu0 %v1237
    %v1239 = vand.u32 %v54, 4294901760
    %v1240 = vsub.f32 %v54, %v1239
    %v1241 = vand.u32 %v1240, 4294901760
    %1242 = vmatprep.subr.mxu0 %v1241
    %v1243 = vand.u32 %v53, 4294901760
    %v1244 = vsub.f32 %v53, %v1243
    %v1245 = vand.u32 %v1244, 4294901760
    %1246 = vmatpush1.msra.mxu0 %v1245
    %v1247 = vand.u32 %v56, 4294901760
    %v1248 = vsub.f32 %v56, %v1247
    %v1249 = vand.u32 %v1248, 4294901760
    %1250 = vmatprep.subr.mxu0 %v1249
    %v1251 = vand.u32 %v55, 4294901760
    %v1252 = vsub.f32 %v55, %v1251
    %v1253 = vand.u32 %v1252, 4294901760
    %1254 = vmatpush1.msra.mxu0 %v1253
    %v1255 = vand.u32 %v58, 4294901760
    %v1256 = vsub.f32 %v58, %v1255
    %v1257 = vand.u32 %v1256, 4294901760
    %1258 = vmatprep.subr.mxu0 %v1257
    %v1259 = vand.u32 %v57, 4294901760
    %v1260 = vsub.f32 %v57, %v1259
    %v1261 = vand.u32 %v1260, 4294901760
    %1262 = vmatpush1.msra.mxu0 %v1261
    %v1263 = vand.u32 %v60, 4294901760
    %v1264 = vsub.f32 %v60, %v1263
    %v1265 = vand.u32 %v1264, 4294901760
    %1266 = vmatprep.subr.mxu0 %v1265
    %v1267 = vand.u32 %v59, 4294901760
    %v1268 = vsub.f32 %v59, %v1267
    %v1269 = vand.u32 %v1268, 4294901760
    %1270 = vmatpush1.msra.mxu0 %v1269
    %v1271 = vand.u32 %v62, 4294901760
    %v1272 = vsub.f32 %v62, %v1271
    %v1273 = vand.u32 %v1272, 4294901760
    %1274 = vmatprep.subr.mxu0 %v1273
    %v1275 = vand.u32 %v61, 4294901760
    %v1276 = vsub.f32 %v61, %v1275
    %v1277 = vand.u32 %v1276, 4294901760
    %1278 = vmatpush1.msra.mxu0 %v1277
    %v1279 = vand.u32 %v64, 4294901760
    %v1280 = vsub.f32 %v64, %v1279
    %v1281 = vand.u32 %v1280, 4294901760
    %1282 = vmatprep.subr.mxu0 %v1281
    %v1283 = vand.u32 %v63, 4294901760
    %v1284 = vsub.f32 %v63, %v1283
    %v1285 = vand.u32 %v1284, 4294901760
    %1286 = vmatpush1.msra.mxu0 %v1285
    %v1287 = vand.u32 %v66, 4294901760
    %v1288 = vsub.f32 %v66, %v1287
    %v1289 = vand.u32 %v1288, 4294901760
    %1290 = vmatprep.subr.mxu0 %v1289
    %v1291 = vand.u32 %v65, 4294901760
    %v1292 = vsub.f32 %v65, %v1291
    %v1293 = vand.u32 %v1292, 4294901760
    %1294 = vmatpush1.msra.mxu0 %v1293
    %v1295 = vand.u32 %v68, 4294901760
    %v1296 = vsub.f32 %v68, %v1295
    %v1297 = vand.u32 %v1296, 4294901760
    %1298 = vmatprep.subr.mxu0 %v1297
    %v1299 = vand.u32 %v67, 4294901760
    %v1300 = vsub.f32 %v67, %v1299
    %v1301 = vand.u32 %v1300, 4294901760
    %1302 = vmatpush1.msra.mxu0 %v1301
    %v1303 = vand.u32 %v70, 4294901760
    %v1304 = vsub.f32 %v70, %v1303
    %v1305 = vand.u32 %v1304, 4294901760
    %1306 = vmatprep.subr.mxu0 %v1305
    %v1307 = vand.u32 %v69, 4294901760
    %v1308 = vsub.f32 %v69, %v1307
    %v1309 = vand.u32 %v1308, 4294901760
    %1310 = vmatpush1.msra.mxu0 %v1309
    %v1311 = vand.u32 %v72, 4294901760
    %v1312 = vsub.f32 %v72, %v1311
    %v1313 = vand.u32 %v1312, 4294901760
    %1314 = vmatprep.subr.mxu0 %v1313
    %v1315 = vand.u32 %v71, 4294901760
    %v1316 = vsub.f32 %v71, %v1315
    %v1317 = vand.u32 %v1316, 4294901760
    %1318 = vmatpush1.msra.mxu0 %v1317
    %v1319 = vand.u32 %v74, 4294901760
    %v1320 = vsub.f32 %v74, %v1319
    %v1321 = vand.u32 %v1320, 4294901760
    %1322 = vmatprep.subr.mxu0 %v1321
    %v1323 = vand.u32 %v73, 4294901760
    %v1324 = vsub.f32 %v73, %v1323
    %v1325 = vand.u32 %v1324, 4294901760
    %1326 = vmatpush1.msra.mxu0 %v1325
    %v1327 = vand.u32 %v76, 4294901760
    %v1328 = vsub.f32 %v76, %v1327
    %v1329 = vand.u32 %v1328, 4294901760
    %1330 = vmatprep.subr.mxu0 %v1329
    %v1331 = vand.u32 %v75, 4294901760
    %v1332 = vsub.f32 %v75, %v1331
    %v1333 = vand.u32 %v1332, 4294901760
    %1334 = vmatpush1.msra.mxu0 %v1333
    %v1335 = vand.u32 %v78, 4294901760
    %v1336 = vsub.f32 %v78, %v1335
    %v1337 = vand.u32 %v1336, 4294901760
    %1338 = vmatprep.subr.mxu0 %v1337
    %v1339 = vand.u32 %v77, 4294901760
    %v1340 = vsub.f32 %v77, %v1339
    %v1341 = vand.u32 %v1340, 4294901760
    %1342 = vmatpush1.msra.mxu0 %v1341
    %v1343 = vand.u32 %v80, 4294901760
    %v1344 = vsub.f32 %v80, %v1343
    %v1345 = vand.u32 %v1344, 4294901760
    %1346 = vmatprep.subr.mxu0 %v1345
    %v1347 = vand.u32 %v79, 4294901760
    %v1348 = vsub.f32 %v79, %v1347
    %v1349 = vand.u32 %v1348, 4294901760
    %1350 = vmatpush1.msra.mxu0 %v1349
    %v1351 = vand.u32 %v82, 4294901760
    %v1352 = vsub.f32 %v82, %v1351
    %v1353 = vand.u32 %v1352, 4294901760
    %1354 = vmatprep.subr.mxu0 %v1353
    %v1355 = vand.u32 %v81, 4294901760
    %v1356 = vsub.f32 %v81, %v1355
    %v1357 = vand.u32 %v1356, 4294901760
    %1358 = vmatpush1.msra.mxu0 %v1357
    %v1359 = vand.u32 %v84, 4294901760
    %v1360 = vsub.f32 %v84, %v1359
    %v1361 = vand.u32 %v1360, 4294901760
    %1362 = vmatprep.subr.mxu0 %v1361
    %v1363 = vand.u32 %v83, 4294901760
    %v1364 = vsub.f32 %v83, %v1363
    %v1365 = vand.u32 %v1364, 4294901760
    %1366 = vmatpush1.msra.mxu0 %v1365
    %v1367 = vand.u32 %v86, 4294901760
    %v1368 = vsub.f32 %v86, %v1367
    %v1369 = vand.u32 %v1368, 4294901760
    %1370 = vmatprep.subr.mxu0 %v1369
    %v1371 = vand.u32 %v85, 4294901760
    %v1372 = vsub.f32 %v85, %v1371
    %v1373 = vand.u32 %v1372, 4294901760
    %1374 = vmatpush1.msra.mxu0 %v1373
    %v1375 = vand.u32 %v16, 4294901760
    %1376 = vmatprep.mubr.f32.mxu0 %v1375
    %v1377 = vand.u32 %v15, 4294901760
    %1378 = vmatmul.mubr.f32.gmra.mrb[0].mxu0 %v1377
    %v1379 = vpop.f32.mrb[0].mxu0
    %v1380 = vadd.f32 %v1079, %v1379
    %v1381 = vpop.f32.mrb[0].mxu0
    %v1382 = vadd.f32 %v1081, %v1381
    %v1383 = vand.u32 %v18, 4294901760
    %1384 = vmatprep.mubr.f32.mxu0 %v1383
    %v1385 = vand.u32 %v17, 4294901760
    %1386 = vmatmul.mubr.f32.gmra.mrb[0].mxu0 %v1385
    %v1387 = vpop.f32.mrb[0].mxu0
    %v1388 = vadd.f32 %v1091, %v1387
    %v1389 = vpop.f32.mrb[0].mxu0
    %v1390 = vadd.f32 %v1093, %v1389
    %v1391 = vand.u32 %v20, 4294901760
    %1392 = vmatprep.mubr.f32.mxu0 %v1391
    %v1393 = vand.u32 %v19, 4294901760
    %1394 = vmatmul.mubr.f32.gmra.mrb[0].mxu0 %v1393
    %v1395 = vpop.f32.mrb[0].mxu0
    %v1396 = vadd.f32 %v1103, %v1395
    %v1397 = vpop.f32.mrb[0].mxu0
    %v1398 = vadd.f32 %v1105, %v1397
    %v1399 = vand.u32 %v22, 4294901760
    %1400 = vmatprep.mubr.f32.mxu0 %v1399
    %v1401 = vand.u32 %v21, 4294901760
    %1402 = vmatmul.mubr.f32.gmra.mrb[0].mxu0 %v1401
    %v1403 = vpop.f32.mrb[0].mxu0
    %v1404 = vadd.f32 %v1115, %v1403
    %v1405 = vpop.f32.mrb[0].mxu0
    %v1406 = vadd.f32 %v1117, %v1405
    %1407 = vdwg.mxu0
    %v1408 = vand.u32 %v24, 4294901760
    %1409 = vmatprep.subr.mxu0 %v1408
    %v1410 = vand.u32 %v23, 4294901760
    %1411 = vmatpush1.msra.mxu0 %v1410
    %v1412 = vand.u32 %v26, 4294901760
    %1413 = vmatprep.subr.mxu0 %v1412
    %v1414 = vand.u32 %v25, 4294901760
    %1415 = vmatpush1.msra.mxu0 %v1414
    %v1416 = vand.u32 %v28, 4294901760
    %1417 = vmatprep.subr.mxu0 %v1416
    %v1418 = vand.u32 %v27, 4294901760
    %1419 = vmatpush1.msra.mxu0 %v1418
    %v1420 = vand.u32 %v30, 4294901760
    %1421 = vmatprep.subr.mxu0 %v1420
    %v1422 = vand.u32 %v29, 4294901760
    %1423 = vmatpush1.msra.mxu0 %v1422
    %v1424 = vand.u32 %v32, 4294901760
    %1425 = vmatprep.subr.mxu0 %v1424
    %v1426 = vand.u32 %v31, 4294901760
    %1427 = vmatpush1.msra.mxu0 %v1426
    %v1428 = vand.u32 %v34, 4294901760
    %1429 = vmatprep.subr.mxu0 %v1428
    %v1430 = vand.u32 %v33, 4294901760
    %1431 = vmatpush1.msra.mxu0 %v1430
    %v1432 = vand.u32 %v36, 4294901760
    %1433 = vmatprep.subr.mxu0 %v1432
    %v1434 = vand.u32 %v35, 4294901760
    %1435 = vmatpush1.msra.mxu0 %v1434
    %v1436 = vand.u32 %v38, 4294901760
    %1437 = vmatprep.subr.mxu0 %v1436
    %v1438 = vand.u32 %v37, 4294901760
    %1439 = vmatpush1.msra.mxu0 %v1438
    %v1440 = vand.u32 %v40, 4294901760
    %1441 = vmatprep.subr.mxu0 %v1440
    %v1442 = vand.u32 %v39, 4294901760
    %1443 = vmatpush1.msra.mxu0 %v1442
    %v1444 = vand.u32 %v42, 4294901760
    %1445 = vmatprep.subr.mxu0 %v1444
    %v1446 = vand.u32 %v41, 4294901760
    %1447 = vmatpush1.msra.mxu0 %v1446
    %v1448 = vand.u32 %v44, 4294901760
    %1449 = vmatprep.subr.mxu0 %v1448
    %v1450 = vand.u32 %v43, 4294901760
    %1451 = vmatpush1.msra.mxu0 %v1450
    %v1452 = vand.u32 %v46, 4294901760
    %1453 = vmatprep.subr.mxu0 %v1452
    %v1454 = vand.u32 %v45, 4294901760
    %1455 = vmatpush1.msra.mxu0 %v1454
    %v1456 = vand.u32 %v48, 4294901760
    %1457 = vmatprep.subr.mxu0 %v1456
    %v1458 = vand.u32 %v47, 4294901760
    %1459 = vmatpush1.msra.mxu0 %v1458
    %v1460 = vand.u32 %v50, 4294901760
    %1461 = vmatprep.subr.mxu0 %v1460
    %v1462 = vand.u32 %v49, 4294901760
    %1463 = vmatpush1.msra.mxu0 %v1462
    %v1464 = vand.u32 %v52, 4294901760
    %1465 = vmatprep.subr.mxu0 %v1464
    %v1466 = vand.u32 %v51, 4294901760
    %1467 = vmatpush1.msra.mxu0 %v1466
    %v1468 = vand.u32 %v54, 4294901760
    %1469 = vmatprep.subr.mxu0 %v1468
    %v1470 = vand.u32 %v53, 4294901760
    %1471 = vmatpush1.msra.mxu0 %v1470
    %v1472 = vand.u32 %v56, 4294901760
    %1473 = vmatprep.subr.mxu0 %v1472
    %v1474 = vand.u32 %v55, 4294901760
    %1475 = vmatpush1.msra.mxu0 %v1474
    %v1476 = vand.u32 %v58, 4294901760
    %1477 = vmatprep.subr.mxu0 %v1476
    %v1478 = vand.u32 %v57, 4294901760
    %1479 = vmatpush1.msra.mxu0 %v1478
    %v1480 = vand.u32 %v60, 4294901760
    %1481 = vmatprep.subr.mxu0 %v1480
    %v1482 = vand.u32 %v59, 4294901760
    %1483 = vmatpush1.msra.mxu0 %v1482
    %v1484 = vand.u32 %v62, 4294901760
    %1485 = vmatprep.subr.mxu0 %v1484
    %v1486 = vand.u32 %v61, 4294901760
    %1487 = vmatpush1.msra.mxu0 %v1486
    %v1488 = vand.u32 %v64, 4294901760
    %1489 = vmatprep.subr.mxu0 %v1488
    %v1490 = vand.u32 %v63, 4294901760
    %1491 = vmatpush1.msra.mxu0 %v1490
    %v1492 = vand.u32 %v66, 4294901760
    %1493 = vmatprep.subr.mxu0 %v1492
    %v1494 = vand.u32 %v65, 4294901760
    %1495 = vmatpush1.msra.mxu0 %v1494
    %v1496 = vand.u32 %v68, 4294901760
    %1497 = vmatprep.subr.mxu0 %v1496
    %v1498 = vand.u32 %v67, 4294901760
    %1499 = vmatpush1.msra.mxu0 %v1498
    %v1500 = vand.u32 %v70, 4294901760
    %1501 = vmatprep.subr.mxu0 %v1500
    %v1502 = vand.u32 %v69, 4294901760
    %1503 = vmatpush1.msra.mxu0 %v1502
    %v1504 = vand.u32 %v72, 4294901760
    %1505 = vmatprep.subr.mxu0 %v1504
    %v1506 = vand.u32 %v71, 4294901760
    %1507 = vmatpush1.msra.mxu0 %v1506
    %v1508 = vand.u32 %v74, 4294901760
    %1509 = vmatprep.subr.mxu0 %v1508
    %v1510 = vand.u32 %v73, 4294901760
    %1511 = vmatpush1.msra.mxu0 %v1510
    %v1512 = vand.u32 %v76, 4294901760
    %1513 = vmatprep.subr.mxu0 %v1512
    %v1514 = vand.u32 %v75, 4294901760
    %1515 = vmatpush1.msra.mxu0 %v1514
    %v1516 = vand.u32 %v78, 4294901760
    %1517 = vmatprep.subr.mxu0 %v1516
    %v1518 = vand.u32 %v77, 4294901760
    %1519 = vmatpush1.msra.mxu0 %v1518
    %v1520 = vand.u32 %v80, 4294901760
    %1521 = vmatprep.subr.mxu0 %v1520
    %v1522 = vand.u32 %v79, 4294901760
    %1523 = vmatpush1.msra.mxu0 %v1522
    %v1524 = vand.u32 %v82, 4294901760
    %1525 = vmatprep.subr.mxu0 %v1524
    %v1526 = vand.u32 %v81, 4294901760
    %1527 = vmatpush1.msra.mxu0 %v1526
    %v1528 = vand.u32 %v84, 4294901760
    %1529 = vmatprep.subr.mxu0 %v1528
    %v1530 = vand.u32 %v83, 4294901760
    %1531 = vmatpush1.msra.mxu0 %v1530
    %v1532 = vand.u32 %v86, 4294901760
    %1533 = vmatprep.subr.mxu0 %v1532
    %v1534 = vand.u32 %v85, 4294901760
    %1535 = vmatpush1.msra.mxu0 %v1534
    %v1536 = vand.u32 %v16, 4294901760
    %1537 = vmatprep.mubr.f32.mxu0 %v1536
    %v1538 = vand.u32 %v15, 4294901760
    %1539 = vmatmul.mubr.f32.gmra.mrb[0].mxu0 %v1538
    %v1540 = vpop.f32.mrb[0].mxu0
    %v1541 = vadd.f32 %v1380, %v1540
    %v1542 = vpop.f32.mrb[0].mxu0
    %v1543 = vadd.f32 %v1382, %v1542
    %v1544 = vand.u32 %v18, 4294901760
    %1545 = vmatprep.mubr.f32.mxu0 %v1544
    %v1546 = vand.u32 %v17, 4294901760
    %1547 = vmatmul.mubr.f32.gmra.mrb[0].mxu0 %v1546
    %v1548 = vpop.f32.mrb[0].mxu0
    %v1549 = vadd.f32 %v1388, %v1548
    %v1550 = vpop.f32.mrb[0].mxu0
    %v1551 = vadd.f32 %v1390, %v1550
    %v1552 = vand.u32 %v20, 4294901760
    %1553 = vmatprep.mubr.f32.mxu0 %v1552
    %v1554 = vand.u32 %v19, 4294901760
    %1555 = vmatmul.mubr.f32.gmra.mrb[0].mxu0 %v1554
    %v1556 = vpop.f32.mrb[0].mxu0
    %v1557 = vadd.f32 %v1396, %v1556
    %v1558 = vpop.f32.mrb[0].mxu0
    %v1559 = vadd.f32 %v1398, %v1558
    %v1560 = vand.u32 %v22, 4294901760
    %1561 = vmatprep.mubr.f32.mxu0 %v1560
    %v1562 = vand.u32 %v21, 4294901760
    %1563 = vmatmul.mubr.f32.gmra.mrb[0].mxu0 %v1562
    %v1564 = vpop.f32.mrb[0].mxu0
    %v1565 = vadd.f32 %v1404, %v1564
    %v1566 = vpop.f32.mrb[0].mxu0
    %v1567 = vadd.f32 %v1406, %v1566
    %1568 = vdwg.mxu0
    %1569 = vst [vmem:[#allocation2] sm:$0xff] %v1541
    %vm1570 = vcmask 261120
    %1571 = vst.msk [vmem:[#allocation2 + $0x8] sm:$0xff] %vm1570, %v1543
    %1572 = vst [vmem:[#allocation2 + $0x10] sm:$0xff] %v1549
    %1573 = vst.msk [vmem:[#allocation2 + $0x18] sm:$0xff] %vm1570, %v1551
    %1574 = vst [vmem:[#allocation2 + $0x20] sm:$0xff] %v1557
    %1575 = vst.msk [vmem:[#allocation2 + $0x28] sm:$0xff] %vm1570, %v1559
    %1576 = vst [vmem:[#allocation2 + $0x30] sm:$0xff] %v1565
    %1577 = vst.msk [vmem:[#allocation2 + $0x38] sm:$0xff] %vm1570, %v1567
    // Predicated region
    $region14: #{tpu_custom_call.1} parent=1 // pred_check
      _
    $region15: #{tpu_custom_call.1} parent=1 // pred_check_branch
      %1579 = sbr.rel (0) target = $region17
    $region16: #{tpu_custom_call.1} parent=1 // pred_region
      %s1581 = ssub.s32 1024, 1024
      %1582 = vsyncadd [#allocation3], %s1581
      %s1583 = sshll.u32 [#allocation2], 4
      %s1584 = int_to_ptr.vmem [resolvable:$true] %s1583
      %1589 = dma.vmem_to_hbm [thread:$0]  %s1584, 1024, %s3, [#allocation3], 256, 256, 16
    $region17: #{tpu_custom_call.1} parent=1 // pred_fallthru
      _
    // Predicated region
    $region18: #{tpu_custom_call.1} parent=1 // pred_check
      _
    $region19: #{tpu_custom_call.1} parent=1 // pred_check_branch
      %1591 = sbr.rel (0) target = $region21
    $region20: #{tpu_custom_call.1} parent=1 // pred_region
      %1592 = dma.done [#allocation3], 1024
    $region21: #{tpu_custom_call.1} parent=1 // pred_fallthru
      _
    %1593 = vsyncpa [#allocation3], 1

</llo_original>
